<compile_context>
chip_gen: v7x
topology: tpu7x:2x2x1
jax: 0.10.0
libtpu: 0.0.40
codegen_flags: <defaults>
</compile_context>

<pallas_src>
import math
import functools

import jax
import jax.numpy as jnp
from jax.experimental import pallas as pl
from jax.experimental.pallas import tpu as pltpu

DTYPE = jnp.float32
# Leave headroom under v7x's 64 MiB/TC physical VMEM; also fine on v5e/v6e.
VMEM_LIMIT = 48 * 1024 * 1024
_SQRT1_2 = 1.0 / math.sqrt(2.0)


def _pick_tile(dim, target):
    """Largest MXU/lane-friendly tile <= target that divides dim exactly."""
    if dim <= target:
        return dim
    for cand in (target, 512, 384, 256, 128, 64, 32, 16, 8):
        if cand <= target and dim % cand == 0:
            return cand
    return dim  # fallback: whole dim (rare, odd sizes)


# ----------------------------- tiled matmul --------------------------------

def _make_matmul_kernel(has_bias, gelu):
    def kernel(*refs):
        if has_bias:
            x_ref, w_ref, b_ref, o_ref, acc_ref = refs
        else:
            x_ref, w_ref, o_ref, acc_ref = refs

        k = pl.program_id(2)

        @pl.when(k == 0)
        def _():
            acc_ref[...] = jnp.zeros_like(acc_ref)

        acc_ref[...] += jnp.dot(x_ref[...], w_ref[...],
                                preferred_element_type=jnp.float32)

        @pl.when(k == pl.num_programs(2) - 1)
        def _():
            y = acc_ref[...]
            if has_bias:
                y = y + b_ref[...].astype(jnp.float32)
            if gelu:
                # nn.GELU() default (approximate='none'): 0.5*x*(1+erf(x/sqrt(2)))
                y = 0.5 * y * (1.0 + jax.lax.erf(y * _SQRT1_2))
            o_ref[...] = y.astype(o_ref.dtype)

    return kernel


def linear(x, w_t, b=None, gelu=False, tm=256, tn=256, tk=512):
    """x: [M, K], w_t: [K, N] (= torch weight.T), b: [N] or None -> [M, N]."""
    M, K = x.shape
    Kw, N = w_t.shape
    assert Kw == K
    tm = _pick_tile(M, tm)
    tn = _pick_tile(N, tn)
    tk = _pick_tile(K, tk)
    nm, nn, nk = M // tm, N // tn, K // tk

    # Deeper pipelining on the weight stream when the K reduction is long.
    w_kwargs = {}
    if nk >= 3:
        w_kwargs["pipeline_mode"] = pl.Buffered(3)

    in_specs = [
        pl.BlockSpec((tm, tk), lambda i, j, k: (i, k)),
        pl.BlockSpec((tk, tn), lambda i, j, k: (k, j), **w_kwargs),
    ]
    inputs = [x, w_t]
    if b is not None:  # skip the bias DMA entirely when there is no bias
        in_specs.append(pl.BlockSpec((1, tn), lambda i, j, k: (0, j)))
        inputs.append(b.reshape(1, N).astype(x.dtype))

    kern = _make_matmul_kernel(b is not None, gelu)
    return pl.pallas_call(
        kern,
        out_shape=jax.ShapeDtypeStruct((M, N), x.dtype),
        grid=(nm, nn, nk),
        in_specs=in_specs,
        out_specs=pl.BlockSpec((tm, tn), lambda i, j, k: (i, j)),
        scratch_shapes=[pltpu.VMEM((tm, tn), jnp.float32)],
        compiler_params=pltpu.CompilerParams(
            dimension_semantics=("parallel", "parallel", "arbitrary"),
            vmem_limit_bytes=VMEM_LIMIT),
    )(*inputs)


# ---------------- matmul fused with residual-add + LayerNorm ----------------

def _matmul_res_ln_kernel(x_ref, w_ref, b_ref, res_ref, g_ref, beta_ref,
                          o_ref, acc_ref, *, eps):
    k = pl.program_id(1)

    @pl.when(k == 0)
    def _():
        acc_ref[...] = jnp.zeros_like(acc_ref)

    acc_ref[...] += jnp.dot(x_ref[...], w_ref[...],
                            preferred_element_type=jnp.float32)

    @pl.when(k == pl.num_programs(1) - 1)
    def _():
        h = (acc_ref[...] + b_ref[...].astype(jnp.float32)
             + res_ref[...].astype(jnp.float32))
        mu = jnp.mean(h, axis=-1, keepdims=True)
        var = jnp.mean(jnp.square(h - mu), axis=-1, keepdims=True)
        y = (h - mu) * jax.lax.rsqrt(var + eps)
        o_ref[...] = (y * g_ref[...] + beta_ref[...]).astype(o_ref.dtype)


def linear_add_layernorm(x, w_t, b, resid, g, beta, eps=1e-5, tm=256, tk=512):
    """LayerNorm(resid + (x @ w_t + b)); output tile spans the full row (N=C)."""
    M, K = x.shape
    _, N = w_t.shape
    tm = _pick_tile(M, tm)
    tk = _pick_tile(K, tk)
    nm, nk = M // tm, K // tk
    kern = functools.partial(_matmul_res_ln_kernel, eps=eps)
    return pl.pallas_call(
        kern,
        out_shape=jax.ShapeDtypeStruct((M, N), x.dtype),
        grid=(nm, nk),
        in_specs=[
            pl.BlockSpec((tm, tk), lambda i, k: (i, k)),
            pl.BlockSpec((tk, N), lambda i, k: (k, 0)),
            pl.BlockSpec((1, N), lambda i, k: (0, 0)),
            pl.BlockSpec((tm, N), lambda i, k: (i, 0)),
            pl.BlockSpec((1, N), lambda i, k: (0, 0)),
            pl.BlockSpec((1, N), lambda i, k: (0, 0)),
        ],
        out_specs=pl.BlockSpec((tm, N), lambda i, k: (i, 0)),
        scratch_shapes=[pltpu.VMEM((tm, N), jnp.float32)],
        compiler_params=pltpu.CompilerParams(
            dimension_semantics=("parallel", "arbitrary"),
            vmem_limit_bytes=VMEM_LIMIT),
    )(x, w_t, b.reshape(1, N).astype(x.dtype), resid,
      g.reshape(1, N).astype(x.dtype), beta.reshape(1, N).astype(x.dtype))


# -------------------------- LayerNorm (no residual) -------------------------

def _layernorm_kernel(x_ref, g_ref, b_ref, o_ref, *, eps):
    h = x_ref[...].astype(jnp.float32)
    mu = jnp.mean(h, axis=-1, keepdims=True)
    var = jnp.mean(jnp.square(h - mu), axis=-1, keepdims=True)
    y = (h - mu) * jax.lax.rsqrt(var + eps)
    o_ref[...] = (y * g_ref[...] + b_ref[...]).astype(o_ref.dtype)


def layernorm(x, g, b, eps=1e-5, tm=512):
    M, C = x.shape
    tm = _pick_tile(M, tm)
    nm = M // tm
    kern = functools.partial(_layernorm_kernel, eps=eps)
    return pl.pallas_call(
        kern,
        out_shape=jax.ShapeDtypeStruct((M, C), x.dtype),
        grid=(nm,),
        in_specs=[
            pl.BlockSpec((tm, C), lambda i: (i, 0)),
            pl.BlockSpec((1, C), lambda i: (0, 0)),
            pl.BlockSpec((1, C), lambda i: (0, 0)),
        ],
        out_specs=pl.BlockSpec((tm, C), lambda i: (i, 0)),
        compiler_params=pltpu.CompilerParams(
            dimension_semantics=("parallel",),
            vmem_limit_bytes=VMEM_LIMIT),
    )(x, g.reshape(1, C).astype(x.dtype), b.reshape(1, C).astype(x.dtype))


# ------------------------ flash causal attention -----------------------------

def _flash_attn_kernel(q_ref, k_ref, v_ref, o_ref, m_sc, l_sc, acc_sc,
                       *, scale, tq, tkv):
    qi = pl.program_id(1)
    ki = pl.program_id(2)

    @pl.when(ki == 0)
    def _():
        m_sc[...] = jnp.full_like(m_sc, -jnp.inf)
        l_sc[...] = jnp.zeros_like(l_sc)
        acc_sc[...] = jnp.zeros_like(acc_sc)

    # Causal tile skipping: kv tile entirely in the future -> no compute.
    @pl.when(ki * tkv < (qi + 1) * tq)
    def _():
        q = q_ref[0].astype(jnp.float32) * scale      # (tq, D) pre-scaled
        k = k_ref[0].astype(jnp.float32)              # (tkv, D)
        v = v_ref[0].astype(jnp.float32)              # (tkv, D)
        s = jnp.dot(q, k.T, preferred_element_type=jnp.float32)   # (tq, tkv)
        row = qi * tq + jax.lax.broadcasted_iota(jnp.int32, s.shape, 0)
        col = ki * tkv + jax.lax.broadcasted_iota(jnp.int32, s.shape, 1)
        s = jnp.where(col <= row, s, -1e30)
        m_new = jnp.maximum(m_sc[...], jnp.max(s, axis=-1, keepdims=True))
        alpha = jnp.exp(m_sc[...] - m_new)
        p = jnp.exp(s - m_new)
        l_sc[...] = alpha * l_sc[...] + jnp.sum(p, axis=-1, keepdims=True)
        acc_sc[...] = alpha * acc_sc[...] + jnp.dot(
            p, v, preferred_element_type=jnp.float32)
        m_sc[...] = m_new

    @pl.when(ki == pl.num_programs(2) - 1)
    def _():
        inv_l = pl.reciprocal(l_sc[...], approx=True)
        o_ref[0] = (acc_sc[...] * inv_l).astype(o_ref.dtype)


def causal_flash_attention(q, k, v, tq=256, tkv=256):
    """q, k, v: [B*H, T, D] -> [B*H, T, D], causal softmax(q k^T / sqrt(D)) v."""
    BH, T, D = q.shape
    scale = 1.0 / math.sqrt(D)
    tq = _pick_tile(T, tq)
    tkv = _pick_tile(T, tkv)
    nq, nkv = T // tq, T // tkv
    kern = functools.partial(_flash_attn_kernel, scale=scale, tq=tq, tkv=tkv)
    q_spec = pl.BlockSpec((1, tq, D), lambda b, qi, ki: (b, qi, 0))
    kv_spec = pl.BlockSpec((1, tkv, D), lambda b, qi, ki: (b, ki, 0))
    return pl.pallas_call(
        kern,
        out_shape=jax.ShapeDtypeStruct((BH, T, D), q.dtype),
        grid=(BH, nq, nkv),
        in_specs=[q_spec, kv_spec, kv_spec],
        out_specs=q_spec,
        scratch_shapes=[
            pltpu.VMEM((tq, 1), jnp.float32),   # running max m
            pltpu.VMEM((tq, 1), jnp.float32),   # running denom l
            pltpu.VMEM((tq, D), jnp.float32),   # output accumulator
        ],
        compiler_params=pltpu.CompilerParams(
            dimension_semantics=("parallel", "parallel", "arbitrary"),
            vmem_limit_bytes=VMEM_LIMIT),
    )(q, k, v)


# --------------------------- parameters & model ---------------------------

def init_params(key, cfg):
    C = cfg["embed_dim"]
    V = cfg["vocab_size"]
    L = cfg["n_layers"]
    std = 0.02
    proj_std = 0.02 / math.sqrt(2 * L)  # out_proj.weight and ff.2.weight
    keys = jax.random.split(key, 3 + L)

    params = {
        "wte": std * jax.random.normal(keys[0], (V, C), DTYPE),
        "wpe": std * jax.random.normal(keys[1], (cfg["block_size"] * 2, C), DTYPE),
        "lm_head_wt": (std * jax.random.normal(keys[2], (V, C), DTYPE)).T,  # [C, V]
        "ln_f_w": jnp.ones((C,), DTYPE),
        "ln_f_b": jnp.zeros((C,), DTYPE),
        "layers": [],
    }
    for l in range(L):
        k = jax.random.split(keys[3 + l], 4)
        params["layers"].append({
            "qkv_wt": (std * jax.random.normal(k[0], (3 * C, C), DTYPE)).T,      # [C, 3C]
            "out_wt": (proj_std * jax.random.normal(k[1], (C, C), DTYPE)).T,      # [C, C]
            "out_b": jnp.zeros((C,), DTYPE),
            "ff1_wt": (std * jax.random.normal(k[2], (4 * C, C), DTYPE)).T,       # [C, 4C]
            "ff1_b": jnp.zeros((4 * C,), DTYPE),
            "ff2_wt": (proj_std * jax.random.normal(k[3], (C, 4 * C), DTYPE)).T,  # [4C, C]
            "ff2_b": jnp.zeros((C,), DTYPE),
            "ln1_w": jnp.ones((C,), DTYPE), "ln1_b": jnp.zeros((C,), DTYPE),
            "ln2_w": jnp.ones((C,), DTYPE), "ln2_b": jnp.zeros((C,), DTYPE),
        })
    return params


def gpt_forward(params, idx, cfg):
    B, T = idx.shape
    C = cfg["embed_dim"]
    H = cfg["n_heads"]
    Dh = C // H
    BT = B * T

    # Embedding lookups + positional embedding (XLA gather glue).
    tok = jnp.take(params["wte"], idx, axis=0)                   # [B, T, C]
    pos = jnp.take(params["wpe"], jnp.arange(T), axis=0)         # [T, C]
    x = (tok + pos[None, :, :]).astype(DTYPE).reshape(BT, C)     # dropout p=0

    for layer in params["layers"]:
        # --- MHSA ---
        qkv = linear(x, layer["qkv_wt"])                          # [BT, 3C], no bias
        # TODO(synk): feed q/k/v straight from the [BT, 3C] slab via BlockSpec
        # column index_maps (removes this transpose); kept as one XLA
        # reshape+transpose for (8,128)-layout safety at small head_dim.
        qkv = qkv.reshape(B, T, 3, H, Dh).transpose(2, 0, 3, 1, 4)
        qkv = qkv.reshape(3, B * H, T, Dh)
        attn = causal_flash_attention(qkv[0], qkv[1], qkv[2])     # [BH, T, Dh]
        attn = attn.reshape(B, H, T, Dh).transpose(0, 2, 1, 3).reshape(BT, C)
        # out-proj fused with post-norm residual: x = ln1(x + sa(x))
        x = linear_add_layernorm(attn, layer["out_wt"], layer["out_b"], x,
                                 layer["ln1_w"], layer["ln1_b"])
        # --- FF ---  x = ln2(x + ff(x)), ff2 fused with residual + LN
        h = linear(x, layer["ff1_wt"], layer["ff1_b"], gelu=True)
        x = linear_add_layernorm(h, layer["ff2_wt"], layer["ff2_b"], x,
                                 layer["ln2_w"], layer["ln2_b"])

    # final norm (dedicated no-residual path) and lm_head
    x = layernorm(x, params["ln_f_w"], params["ln_f_b"])
    logits = linear(x, params["lm_head_wt"])                      # [BT, V], no bias
    return logits.reshape(B, T, cfg["vocab_size"])


# TODO(synk): KVCache / generate() decode loop, the use_rope=True (RoPE) path,
# and RMSNorm (norm_type != 'layernorm') are not exercised here; forward is
# implemented for norm_type='layernorm', use_rope=False, eval mode (dropout=0).

if __name__ == "__main__":
    cfg = dict(
        vocab_size=64,
        block_size=16,
        embed_dim=32,
        n_heads=2,
        n_layers=2,
        dropout=0.0,
        norm_type="layernorm",
        use_rope=False,
    )
    key = jax.random.PRNGKey(0)
    pkey, ikey = jax.random.split(key)
    params = init_params(pkey, cfg)
    idx = jax.random.randint(ikey, (2, 8), 0, cfg["vocab_size"], dtype=jnp.int32)

    fwd = jax.jit(lambda p, i: gpt_forward(p, i, cfg))
    logits = fwd(params, idx)
    jax.block_until_ready(logits)
    assert logits.shape == (2, 8, cfg["vocab_size"])
    assert logits.dtype == DTYPE
    assert bool(jnp.all(jnp.isfinite(logits)))
    print("KERNEL_OK")
</pallas_src>

<mosaic_0001>
module attributes {stable_mosaic.version = 11 : i64} {
  func.func @kernel(%arg0: i32, %arg1: i32, %arg2: i32, %arg3: memref<16x32xf32, #tpu.memory_space<vmem>>, %arg4: memref<32x96xf32, #tpu.memory_space<vmem>>, %arg5: memref<16x96xf32, #tpu.memory_space<vmem>>, %arg6: memref<16x96xf32, #tpu.memory_space<vmem>>) attributes {dimension_semantics = [#tpu.dimension_semantics<parallel>, #tpu.dimension_semantics<parallel>, #tpu.dimension_semantics<arbitrary>], iteration_bounds = array<i64: 1, 1, 1>, scalar_prefetch = 0 : i64, scratch_operands = 1 : i64, tpu.core_type = #tpu.core_type<tc>, window_params = [{transform_indices = @transform_0, window_bounds = array<i64: 16, 32>}, {transform_indices = @transform_1, window_bounds = array<i64: 32, 96>}, {transform_indices = @transform_2, window_bounds = array<i64: 16, 96>}]} {
    %c0_i32 = arith.constant 0 : i32
    %0 = arith.cmpi eq, %arg2, %c0_i32 : i32
    %1 = arith.extui %0 : i1 to i32
    %c0_i32_0 = arith.constant 0 : i32
    %2 = arith.cmpi ne, %1, %c0_i32_0 : i32
    scf.if %2 {
      %cst_10 = arith.constant 0.000000e+00 : f32
      %12 = vector.broadcast %cst_10 : f32 to vector<16x96xf32>
      %c0_11 = arith.constant 0 : index
      %c0_12 = arith.constant 0 : index
      %13 = vector.load %arg6[%c0_11, %c0_12] : memref<16x96xf32, #tpu.memory_space<vmem>>, vector<16x96xf32>
      tpu.vector_store %arg6[%c0_11, %c0_12], %12 {strides = array<i32>} : memref<16x96xf32, #tpu.memory_space<vmem>>, vector<16x96xf32>,
    } else {
    }
    %c0 = arith.constant 0 : index
    %c0_1 = arith.constant 0 : index
    %3 = vector.load %arg6[%c0, %c0_1] : memref<16x96xf32, #tpu.memory_space<vmem>>, vector<16x96xf32>
    %c0_2 = arith.constant 0 : index
    %c0_3 = arith.constant 0 : index
    %4 = vector.load %arg3[%c0_2, %c0_3] : memref<16x32xf32, #tpu.memory_space<vmem>>, vector<16x32xf32>
    %c0_4 = arith.constant 0 : index
    %c0_5 = arith.constant 0 : index
    %5 = vector.load %arg4[%c0_4, %c0_5] : memref<32x96xf32, #tpu.memory_space<vmem>>, vector<32x96xf32>
    %cst = arith.constant dense<0.000000e+00> : vector<16x96xf32>
    %6 = tpu.matmul %4, %5, %cst {dimension_numbers = #tpu.dot_dimension_numbers<[1], [0], [0], [1], [0, 0, 1, 1], [], []>} : vector<16x32xf32>, vector<32x96xf32>, vector<16x96xf32> -> vector<16x96xf32>
    %7 = arith.addf %3, %6 : vector<16x96xf32>
    %c0_6 = arith.constant 0 : index
    %c0_7 = arith.constant 0 : index
    %8 = vector.load %arg6[%c0_6, %c0_7] : memref<16x96xf32, #tpu.memory_space<vmem>>, vector<16x96xf32>
    tpu.vector_store %arg6[%c0_6, %c0_7], %7 {strides = array<i32>} : memref<16x96xf32, #tpu.memory_space<vmem>>, vector<16x96xf32>,
    %c0_i32_8 = arith.constant 0 : i32
    %9 = arith.cmpi eq, %arg2, %c0_i32_8 : i32
    %10 = arith.extui %9 : i1 to i32
    %c0_i32_9 = arith.constant 0 : i32
    %11 = arith.cmpi ne, %10, %c0_i32_9 : i32
    scf.if %11 {
      %c0_10 = arith.constant 0 : index
      %c0_11 = arith.constant 0 : index
      %12 = vector.load %arg6[%c0_10, %c0_11] : memref<16x96xf32, #tpu.memory_space<vmem>>, vector<16x96xf32>
      %c0_12 = arith.constant 0 : index
      %c0_13 = arith.constant 0 : index
      %13 = vector.load %arg5[%c0_12, %c0_13] : memref<16x96xf32, #tpu.memory_space<vmem>>, vector<16x96xf32>
      tpu.vector_store %arg5[%c0_12, %c0_13], %12 {strides = array<i32>} : memref<16x96xf32, #tpu.memory_space<vmem>>, vector<16x96xf32>,
    } else {
    }
    return
  }
  func.func @transform_0(%arg0: i32, %arg1: i32, %arg2: i32) -> (i32, i32) {
    %c0_i32 = arith.constant 0 : i32
    return %arg0, %arg2 : i32, i32
  }
  func.func @transform_1(%arg0: i32, %arg1: i32, %arg2: i32) -> (i32, i32) {
    %c0_i32 = arith.constant 0 : i32
    return %arg2, %arg1 : i32, i32
  }
  func.func @transform_2(%arg0: i32, %arg1: i32, %arg2: i32) -> (i32, i32) {
    %c0_i32 = arith.constant 0 : i32
    return %arg0, %arg1 : i32, i32
  }
}

module attributes {stable_mosaic.version = 11 : i64} {
  func.func @_flash_attn_kernel(%arg0: i32, %arg1: i32, %arg2: i32, %arg3: memref<1x8x16xf32, #tpu.memory_space<vmem>>, %arg4: memref<1x8x16xf32, #tpu.memory_space<vmem>>, %arg5: memref<1x8x16xf32, #tpu.memory_space<vmem>>, %arg6: memref<1x8x16xf32, #tpu.memory_space<vmem>>, %arg7: memref<8x1xf32, #tpu.memory_space<vmem>>, %arg8: memref<8x1xf32, #tpu.memory_space<vmem>>, %arg9: memref<8x16xf32, #tpu.memory_space<vmem>>) attributes {dimension_semantics = [#tpu.dimension_semantics<parallel>, #tpu.dimension_semantics<parallel>, #tpu.dimension_semantics<arbitrary>], iteration_bounds = array<i64: 4, 1, 1>, scalar_prefetch = 0 : i64, scratch_operands = 3 : i64, tpu.core_type = #tpu.core_type<tc>, window_params = [{transform_indices = @transform_0, window_bounds = array<i64: 1, 8, 16>}, {transform_indices = @transform_1, window_bounds = array<i64: 1, 8, 16>}, {transform_indices = @transform_2, window_bounds = array<i64: 1, 8, 16>}, {transform_indices = @transform_3, window_bounds = array<i64: 1, 8, 16>}]} {
    %c0_i32 = arith.constant 0 : i32
    %0 = arith.cmpi eq, %arg2, %c0_i32 : i32
    %1 = arith.extui %0 : i1 to i32
    %c0_i32_0 = arith.constant 0 : i32
    %2 = arith.cmpi ne, %1, %c0_i32_0 : i32
    scf.if %2 {
      %cst = arith.constant 0xFF800000 : f32
      %12 = vector.broadcast %cst : f32 to vector<8x1xf32>
      %c0 = arith.constant 0 : index
      %c0_5 = arith.constant 0 : index
      %13 = vector.load %arg7[%c0, %c0_5] : memref<8x1xf32, #tpu.memory_space<vmem>>, vector<8x1xf32>
      tpu.vector_store %arg7[%c0, %c0_5], %12 {strides = array<i32>} : memref<8x1xf32, #tpu.memory_space<vmem>>, vector<8x1xf32>,
      %cst_6 = arith.constant 0.000000e+00 : f32
      %14 = vector.broadcast %cst_6 : f32 to vector<8x1xf32>
      %c0_7 = arith.constant 0 : index
      %c0_8 = arith.constant 0 : index
      %15 = vector.load %arg8[%c0_7, %c0_8] : memref<8x1xf32, #tpu.memory_space<vmem>>, vector<8x1xf32>
      tpu.vector_store %arg8[%c0_7, %c0_8], %14 {strides = array<i32>} : memref<8x1xf32, #tpu.memory_space<vmem>>, vector<8x1xf32>,
      %cst_9 = arith.constant 0.000000e+00 : f32
      %16 = vector.broadcast %cst_9 : f32 to vector<8x16xf32>
      %c0_10 = arith.constant 0 : index
      %c0_11 = arith.constant 0 : index
      %17 = vector.load %arg9[%c0_10, %c0_11] : memref<8x16xf32, #tpu.memory_space<vmem>>, vector<8x16xf32>
      tpu.vector_store %arg9[%c0_10, %c0_11], %16 {strides = array<i32>} : memref<8x16xf32, #tpu.memory_space<vmem>>, vector<8x16xf32>,
    } else {
    }
    %c8_i32 = arith.constant 8 : i32
    %3 = arith.muli %arg2, %c8_i32 : i32
    %c1_i32 = arith.constant 1 : i32
    %4 = arith.addi %arg1, %c1_i32 : i32
    %c8_i32_1 = arith.constant 8 : i32
    %5 = arith.muli %4, %c8_i32_1 : i32
    %6 = arith.cmpi slt, %3, %5 : i32
    %7 = arith.extui %6 : i1 to i32
    %c0_i32_2 = arith.constant 0 : i32
    %8 = arith.cmpi ne, %7, %c0_i32_2 : i32
    scf.if %8 {
      %c0 = arith.constant 0 : index
      %c0_5 = arith.constant 0 : index
      %c0_6 = arith.constant 0 : index
      %12 = vector.load %arg3[%c0, %c0_5, %c0_6] : memref<1x8x16xf32, #tpu.memory_space<vmem>>, vector<1x8x16xf32>
      %13 = vector.shape_cast %12 : vector<1x8x16xf32> to vector<8x16xf32>
      %cst = arith.constant 2.500000e-01 : f32
      %14 = vector.broadcast %cst : f32 to vector<8x16xf32>
      %15 = arith.mulf %13, %14 : vector<8x16xf32>
      %c0_7 = arith.constant 0 : index
      %c0_8 = arith.constant 0 : index
      %c0_9 = arith.constant 0 : index
      %16 = vector.load %arg4[%c0_7, %c0_8, %c0_9] : memref<1x8x16xf32, #tpu.memory_space<vmem>>, vector<1x8x16xf32>
      %17 = vector.shape_cast %16 : vector<1x8x16xf32> to vector<8x16xf32>
      %c0_10 = arith.constant 0 : index
      %c0_11 = arith.constant 0 : index
      %c0_12 = arith.constant 0 : index
      %18 = vector.load %arg5[%c0_10, %c0_11, %c0_12] : memref<1x8x16xf32, #tpu.memory_space<vmem>>, vector<1x8x16xf32>
      %19 = vector.shape_cast %18 : vector<1x8x16xf32> to vector<8x16xf32>
      %20 = tpu.transpose %17, [1, 0] : vector<8x16xf32> -> vector<16x8xf32>
      %cst_13 = arith.constant dense<0.000000e+00> : vector<8x8xf32>
      %21 = tpu.matmul %15, %20, %cst_13 {dimension_numbers = #tpu.dot_dimension_numbers<[1], [0], [0], [1], [0, 0, 1, 1], [], []>} : vector<8x16xf32>, vector<16x8xf32>, vector<8x8xf32> -> vector<8x8xf32>
      %c8_i32_14 = arith.constant 8 : i32
      %22 = arith.muli %arg1, %c8_i32_14 : i32
      %23 = tpu.iota {dimensions = array<i32: 0>} : vector<8x8xi32>
      %24 = vector.broadcast %22 : i32 to vector<8x8xi32>
      %25 = arith.addi %24, %23 : vector<8x8xi32>
      %c8_i32_15 = arith.constant 8 : i32
      %26 = arith.muli %arg2, %c8_i32_15 : i32
      %27 = tpu.iota {dimensions = array<i32: 1>} : vector<8x8xi32>
      %28 = vector.broadcast %26 : i32 to vector<8x8xi32>
      %29 = arith.addi %28, %27 : vector<8x8xi32>
      %30 = arith.cmpi sle, %29, %25 : vector<8x8xi32>
      %cst_16 = arith.constant -1.000000e+30 : f32
      %31 = vector.broadcast %cst_16 : f32 to vector<8x8xf32>
      %32 = arith.select %30, %21, %31 : vector<8x8xi1>, vector<8x8xf32>
      %c0_17 = arith.constant 0 : index
      %c0_18 = arith.constant 0 : index
      %33 = vector.load %arg7[%c0_17, %c0_18] : memref<8x1xf32, #tpu.memory_space<vmem>>, vector<8x1xf32>
      %cst_19 = arith.constant dense<0xFF800000> : vector<8xf32>
      %34 = vector.multi_reduction <maximumf>, %32, %cst_19 [1] : vector<8x8xf32> to vector<8xf32>
      %35 = vector.shape_cast %34 : vector<8xf32> to vector<8x1xf32>
      %36 = arith.maximumf %33, %35 : vector<8x1xf32>
      %c0_20 = arith.constant 0 : index
      %c0_21 = arith.constant 0 : index
      %37 = vector.load %arg7[%c0_20, %c0_21] : memref<8x1xf32, #tpu.memory_space<vmem>>, vector<8x1xf32>
      %38 = arith.subf %37, %36 : vector<8x1xf32>
      %39 = math.exp %38 : vector<8x1xf32>
      %40 = vector.broadcast %36 : vector<8x1xf32> to vector<8x8xf32>
      %41 = arith.subf %32, %40 : vector<8x8xf32>
      %42 = math.exp %41 : vector<8x8xf32>
      %c0_22 = arith.constant 0 : index
      %c0_23 = arith.constant 0 : index
      %43 = vector.load %arg8[%c0_22, %c0_23] : memref<8x1xf32, #tpu.memory_space<vmem>>, vector<8x1xf32>
      %44 = arith.mulf %39, %43 : vector<8x1xf32>
      %cst_24 = arith.constant dense<0.000000e+00> : vector<8xf32>
      %45 = vector.multi_reduction <add>, %42, %cst_24 [1] : vector<8x8xf32> to vector<8xf32>
      %46 = vector.shape_cast %45 : vector<8xf32> to vector<8x1xf32>
      %47 = arith.addf %44, %46 : vector<8x1xf32>
      %c0_25 = arith.constant 0 : index
      %c0_26 = arith.constant 0 : index
      %48 = vector.load %arg8[%c0_25, %c0_26] : memref<8x1xf32, #tpu.memory_space<vmem>>, vector<8x1xf32>
      tpu.vector_store %arg8[%c0_25, %c0_26], %47 {strides = array<i32>} : memref<8x1xf32, #tpu.memory_space<vmem>>, vector<8x1xf32>,
      %c0_27 = arith.constant 0 : index
      %c0_28 = arith.constant 0 : index
      %49 = vector.load %arg9[%c0_27, %c0_28] : memref<8x16xf32, #tpu.memory_space<vmem>>, vector<8x16xf32>
      %50 = vector.broadcast %39 : vector<8x1xf32> to vector<8x16xf32>
      %51 = arith.mulf %50, %49 : vector<8x16xf32>
      %cst_29 = arith.constant dense<0.000000e+00> : vector<8x16xf32>
      %52 = tpu.matmul %42, %19, %cst_29 {dimension_numbers = #tpu.dot_dimension_numbers<[1], [0], [0], [1], [0, 0, 1, 1], [], []>} : vector<8x8xf32>, vector<8x16xf32>, vector<8x16xf32> -> vector<8x16xf32>
      %53 = arith.addf %51, %52 : vector<8x16xf32>
      %c0_30 = arith.constant 0 : index
      %c0_31 = arith.constant 0 : index
      %54 = vector.load %arg9[%c0_30, %c0_31] : memref<8x16xf32, #tpu.memory_space<vmem>>, vector<8x16xf32>
      tpu.vector_store %arg9[%c0_30, %c0_31], %53 {strides = array<i32>} : memref<8x16xf32, #tpu.memory_space<vmem>>, vector<8x16xf32>,
      %c0_32 = arith.constant 0 : index
      %c0_33 = arith.constant 0 : index
      %55 = vector.load %arg7[%c0_32, %c0_33] : memref<8x1xf32, #tpu.memory_space<vmem>>, vector<8x1xf32>
      tpu.vector_store %arg7[%c0_32, %c0_33], %36 {strides = array<i32>} : memref<8x1xf32, #tpu.memory_space<vmem>>, vector<8x1xf32>,
    } else {
    }
    %c0_i32_3 = arith.constant 0 : i32
    %9 = arith.cmpi eq, %arg2, %c0_i32_3 : i32
    %10 = arith.extui %9 : i1 to i32
    %c0_i32_4 = arith.constant 0 : i32
    %11 = arith.cmpi ne, %10, %c0_i32_4 : i32
    scf.if %11 {
      %c0 = arith.constant 0 : index
      %c0_5 = arith.constant 0 : index
      %12 = vector.load %arg8[%c0, %c0_5] : memref<8x1xf32, #tpu.memory_space<vmem>>, vector<8x1xf32>
      %13 = tpu.reciprocal %12 {approx = true} : vector<8x1xf32> -> vector<8x1xf32>
      %c0_6 = arith.constant 0 : index
      %c0_7 = arith.constant 0 : index
      %14 = vector.load %arg9[%c0_6, %c0_7] : memref<8x16xf32, #tpu.memory_space<vmem>>, vector<8x16xf32>
      %15 = vector.broadcast %13 : vector<8x1xf32> to vector<8x16xf32>
      %16 = arith.mulf %14, %15 : vector<8x16xf32>
      %c0_8 = arith.constant 0 : index
      %c0_9 = arith.constant 0 : index
      %c0_10 = arith.constant 0 : index
      %17 = vector.load %arg6[%c0_8, %c0_9, %c0_10] : memref<1x8x16xf32, #tpu.memory_space<vmem>>, vector<1x8x16xf32>
      %18 = vector.shape_cast %17 : vector<1x8x16xf32> to vector<8x16xf32>
      %19 = vector.shape_cast %16 : vector<8x16xf32> to vector<1x8x16xf32>
      tpu.vector_store %arg6[%c0_8, %c0_9, %c0_10], %19 {strides = array<i32>} : memref<1x8x16xf32, #tpu.memory_space<vmem>>, vector<1x8x16xf32>,
    } else {
    }
    return
  }
  func.func @transform_0(%arg0: i32, %arg1: i32, %arg2: i32) -> (i32, i32, i32) {
    %c0_i32 = arith.constant 0 : i32
    %c0_i32_0 = arith.constant 0 : i32
    return %arg0, %arg1, %c0_i32 : i32, i32, i32
  }
  func.func @transform_1(%arg0: i32, %arg1: i32, %arg2: i32) -> (i32, i32, i32) {
    %c0_i32 = arith.constant 0 : i32
    %c0_i32_0 = arith.constant 0 : i32
    return %arg0, %arg2, %c0_i32 : i32, i32, i32
  }
  func.func @transform_2(%arg0: i32, %arg1: i32, %arg2: i32) -> (i32, i32, i32) {
    %c0_i32 = arith.constant 0 : i32
    %c0_i32_0 = arith.constant 0 : i32
    return %arg0, %arg2, %c0_i32 : i32, i32, i32
  }
  func.func @transform_3(%arg0: i32, %arg1: i32, %arg2: i32) -> (i32, i32, i32) {
    %c0_i32 = arith.constant 0 : i32
    %c0_i32_0 = arith.constant 0 : i32
    return %arg0, %arg1, %c0_i32 : i32, i32, i32
  }
}

module attributes {stable_mosaic.version = 11 : i64} {
  func.func @_matmul_res_ln_kernel(%arg0: i32, %arg1: i32, %arg2: memref<16x32xf32, #tpu.memory_space<vmem>>, %arg3: memref<32x32xf32, #tpu.memory_space<vmem>>, %arg4: memref<1x32xf32, #tpu.memory_space<vmem>>, %arg5: memref<16x32xf32, #tpu.memory_space<vmem>>, %arg6: memref<1x32xf32, #tpu.memory_space<vmem>>, %arg7: memref<1x32xf32, #tpu.memory_space<vmem>>, %arg8: memref<16x32xf32, #tpu.memory_space<vmem>>, %arg9: memref<16x32xf32, #tpu.memory_space<vmem>>) attributes {dimension_semantics = [#tpu.dimension_semantics<parallel>, #tpu.dimension_semantics<arbitrary>], iteration_bounds = array<i64: 1, 1>, scalar_prefetch = 0 : i64, scratch_operands = 1 : i64, tpu.core_type = #tpu.core_type<tc>, window_params = [{transform_indices = @transform_0, window_bounds = array<i64: 16, 32>}, {transform_indices = @transform_1, window_bounds = array<i64: 32, 32>}, {pipeline_mode = #tpu.pipeline_mode<synchronous>, transform_indices = @transform_2, window_bounds = array<i64: 1, 32>}, {transform_indices = @transform_3, window_bounds = array<i64: 16, 32>}, {pipeline_mode = #tpu.pipeline_mode<synchronous>, transform_indices = @transform_4, window_bounds = array<i64: 1, 32>}, {pipeline_mode = #tpu.pipeline_mode<synchronous>, transform_indices = @transform_5, window_bounds = array<i64: 1, 32>}, {transform_indices = @transform_6, window_bounds = array<i64: 16, 32>}]} {
    %c0_i32 = arith.constant 0 : i32
    %0 = arith.cmpi eq, %arg1, %c0_i32 : i32
    %1 = arith.extui %0 : i1 to i32
    %c0_i32_0 = arith.constant 0 : i32
    %2 = arith.cmpi ne, %1, %c0_i32_0 : i32
    scf.if %2 {
      %cst_10 = arith.constant 0.000000e+00 : f32
      %12 = vector.broadcast %cst_10 : f32 to vector<16x32xf32>
      %c0_11 = arith.constant 0 : index
      %c0_12 = arith.constant 0 : index
      %13 = vector.load %arg9[%c0_11, %c0_12] : memref<16x32xf32, #tpu.memory_space<vmem>>, vector<16x32xf32>
      tpu.vector_store %arg9[%c0_11, %c0_12], %12 {strides = array<i32>} : memref<16x32xf32, #tpu.memory_space<vmem>>, vector<16x32xf32>,
    } else {
    }
    %c0 = arith.constant 0 : index
    %c0_1 = arith.constant 0 : index
    %3 = vector.load %arg9[%c0, %c0_1] : memref<16x32xf32, #tpu.memory_space<vmem>>, vector<16x32xf32>
    %c0_2 = arith.constant 0 : index
    %c0_3 = arith.constant 0 : index
    %4 = vector.load %arg2[%c0_2, %c0_3] : memref<16x32xf32, #tpu.memory_space<vmem>>, vector<16x32xf32>
    %c0_4 = arith.constant 0 : index
    %c0_5 = arith.constant 0 : index
    %5 = vector.load %arg3[%c0_4, %c0_5] : memref<32x32xf32, #tpu.memory_space<vmem>>, vector<32x32xf32>
    %cst = arith.constant dense<0.000000e+00> : vector<16x32xf32>
    %6 = tpu.matmul %4, %5, %cst {dimension_numbers = #tpu.dot_dimension_numbers<[1], [0], [0], [1], [0, 0, 1, 1], [], []>} : vector<16x32xf32>, vector<32x32xf32>, vector<16x32xf32> -> vector<16x32xf32>
    %7 = arith.addf %3, %6 : vector<16x32xf32>
    %c0_6 = arith.constant 0 : index
    %c0_7 = arith.constant 0 : index
    %8 = vector.load %arg9[%c0_6, %c0_7] : memref<16x32xf32, #tpu.memory_space<vmem>>, vector<16x32xf32>
    tpu.vector_store %arg9[%c0_6, %c0_7], %7 {strides = array<i32>} : memref<16x32xf32, #tpu.memory_space<vmem>>, vector<16x32xf32>,
    %c0_i32_8 = arith.constant 0 : i32
    %9 = arith.cmpi eq, %arg1, %c0_i32_8 : i32
    %10 = arith.extui %9 : i1 to i32
    %c0_i32_9 = arith.constant 0 : i32
    %11 = arith.cmpi ne, %10, %c0_i32_9 : i32
    scf.if %11 {
      %c0_10 = arith.constant 0 : index
      %c0_11 = arith.constant 0 : index
      %12 = vector.load %arg9[%c0_10, %c0_11] : memref<16x32xf32, #tpu.memory_space<vmem>>, vector<16x32xf32>
      %c0_12 = arith.constant 0 : index
      %c0_13 = arith.constant 0 : index
      %13 = vector.load %arg4[%c0_12, %c0_13] : memref<1x32xf32, #tpu.memory_space<vmem>>, vector<1x32xf32>
      %14 = vector.broadcast %13 : vector<1x32xf32> to vector<16x32xf32>
      %15 = arith.addf %12, %14 : vector<16x32xf32>
      %c0_14 = arith.constant 0 : index
      %c0_15 = arith.constant 0 : index
      %16 = vector.load %arg5[%c0_14, %c0_15] : memref<16x32xf32, #tpu.memory_space<vmem>>, vector<16x32xf32>
      %17 = arith.addf %15, %16 : vector<16x32xf32>
      %cst_16 = arith.constant dense<0.000000e+00> : vector<16xf32>
      %18 = vector.multi_reduction <add>, %17, %cst_16 [1] : vector<16x32xf32> to vector<16xf32>
      %19 = vector.shape_cast %18 : vector<16xf32> to vector<16x1xf32>
      %cst_17 = arith.constant 3.200000e+01 : f32
      %20 = vector.broadcast %cst_17 : f32 to vector<16x1xf32>
      %21 = arith.divf %19, %20 : vector<16x1xf32>
      %22 = vector.broadcast %21 : vector<16x1xf32> to vector<16x32xf32>
      %23 = arith.subf %17, %22 : vector<16x32xf32>
      %24 = arith.mulf %23, %23 : vector<16x32xf32>
      %cst_18 = arith.constant dense<0.000000e+00> : vector<16xf32>
      %25 = vector.multi_reduction <add>, %24, %cst_18 [1] : vector<16x32xf32> to vector<16xf32>
      %26 = vector.shape_cast %25 : vector<16xf32> to vector<16x1xf32>
      %cst_19 = arith.constant 3.200000e+01 : f32
      %27 = vector.broadcast %cst_19 : f32 to vector<16x1xf32>
      %28 = arith.divf %26, %27 : vector<16x1xf32>
      %29 = vector.broadcast %21 : vector<16x1xf32> to vector<16x32xf32>
      %30 = arith.subf %17, %29 : vector<16x32xf32>
      %cst_20 = arith.constant 9.99999974E-6 : f32
      %31 = vector.broadcast %cst_20 : f32 to vector<16x1xf32>
      %32 = arith.addf %28, %31 : vector<16x1xf32>
      %33 = math.rsqrt %32 : vector<16x1xf32>
      %34 = vector.broadcast %33 : vector<16x1xf32> to vector<16x32xf32>
      %35 = arith.mulf %30, %34 : vector<16x32xf32>
      %c0_21 = arith.constant 0 : index
      %c0_22 = arith.constant 0 : index
      %36 = vector.load %arg6[%c0_21, %c0_22] : memref<1x32xf32, #tpu.memory_space<vmem>>, vector<1x32xf32>
      %37 = vector.broadcast %36 : vector<1x32xf32> to vector<16x32xf32>
      %38 = arith.mulf %35, %37 : vector<16x32xf32>
      %c0_23 = arith.constant 0 : index
      %c0_24 = arith.constant 0 : index
      %39 = vector.load %arg7[%c0_23, %c0_24] : memref<1x32xf32, #tpu.memory_space<vmem>>, vector<1x32xf32>
      %40 = vector.broadcast %39 : vector<1x32xf32> to vector<16x32xf32>
      %41 = arith.addf %38, %40 : vector<16x32xf32>
      %c0_25 = arith.constant 0 : index
      %c0_26 = arith.constant 0 : index
      %42 = vector.load %arg8[%c0_25, %c0_26] : memref<16x32xf32, #tpu.memory_space<vmem>>, vector<16x32xf32>
      tpu.vector_store %arg8[%c0_25, %c0_26], %41 {strides = array<i32>} : memref<16x32xf32, #tpu.memory_space<vmem>>, vector<16x32xf32>,
    } else {
    }
    return
  }
  func.func @transform_0(%arg0: i32, %arg1: i32) -> (i32, i32) {
    %c0_i32 = arith.constant 0 : i32
    return %arg0, %arg1 : i32, i32
  }
  func.func @transform_1(%arg0: i32, %arg1: i32) -> (i32, i32) {
    %c0_i32 = arith.constant 0 : i32
    %c0_i32_0 = arith.constant 0 : i32
    return %arg1, %c0_i32 : i32, i32
  }
  func.func @transform_2(%arg0: i32, %arg1: i32) -> (i32, i32) {
    %c0_i32 = arith.constant 0 : i32
    %c0_i32_0 = arith.constant 0 : i32
    %c0_i32_1 = arith.constant 0 : i32
    return %c0_i32, %c0_i32_0 : i32, i32
  }
  func.func @transform_3(%arg0: i32, %arg1: i32) -> (i32, i32) {
    %c0_i32 = arith.constant 0 : i32
    %c0_i32_0 = arith.constant 0 : i32
    return %arg0, %c0_i32 : i32, i32
  }
  func.func @transform_4(%arg0: i32, %arg1: i32) -> (i32, i32) {
    %c0_i32 = arith.constant 0 : i32
    %c0_i32_0 = arith.constant 0 : i32
    %c0_i32_1 = arith.constant 0 : i32
    return %c0_i32, %c0_i32_0 : i32, i32
  }
  func.func @transform_5(%arg0: i32, %arg1: i32) -> (i32, i32) {
    %c0_i32 = arith.constant 0 : i32
    %c0_i32_0 = arith.constant 0 : i32
    %c0_i32_1 = arith.constant 0 : i32
    return %c0_i32, %c0_i32_0 : i32, i32
  }
  func.func @transform_6(%arg0: i32, %arg1: i32) -> (i32, i32) {
    %c0_i32 = arith.constant 0 : i32
    %c0_i32_0 = arith.constant 0 : i32
    return %arg0, %c0_i32 : i32, i32
  }
}

module attributes {stable_mosaic.version = 11 : i64} {
  func.func @kernel(%arg0: i32, %arg1: i32, %arg2: i32, %arg3: memref<16x32xf32, #tpu.memory_space<vmem>>, %arg4: memref<32x128xf32, #tpu.memory_space<vmem>>, %arg5: memref<1x128xf32, #tpu.memory_space<vmem>>, %arg6: memref<16x128xf32, #tpu.memory_space<vmem>>, %arg7: memref<16x128xf32, #tpu.memory_space<vmem>>) attributes {dimension_semantics = [#tpu.dimension_semantics<parallel>, #tpu.dimension_semantics<parallel>, #tpu.dimension_semantics<arbitrary>], iteration_bounds = array<i64: 1, 1, 1>, scalar_prefetch = 0 : i64, scratch_operands = 1 : i64, tpu.core_type = #tpu.core_type<tc>, window_params = [{transform_indices = @transform_0, window_bounds = array<i64: 16, 32>}, {transform_indices = @transform_1, window_bounds = array<i64: 32, 128>}, {transform_indices = @transform_2, window_bounds = array<i64: 1, 128>}, {transform_indices = @transform_3, window_bounds = array<i64: 16, 128>}]} {
    %c0_i32 = arith.constant 0 : i32
    %0 = arith.cmpi eq, %arg2, %c0_i32 : i32
    %1 = arith.extui %0 : i1 to i32
    %c0_i32_0 = arith.constant 0 : i32
    %2 = arith.cmpi ne, %1, %c0_i32_0 : i32
    scf.if %2 {
      %cst_10 = arith.constant 0.000000e+00 : f32
      %12 = vector.broadcast %cst_10 : f32 to vector<16x128xf32>
      %c0_11 = arith.constant 0 : index
      %c0_12 = arith.constant 0 : index
      %13 = vector.load %arg7[%c0_11, %c0_12] : memref<16x128xf32, #tpu.memory_space<vmem>>, vector<16x128xf32>
      tpu.vector_store %arg7[%c0_11, %c0_12], %12 {strides = array<i32>} : memref<16x128xf32, #tpu.memory_space<vmem>>, vector<16x128xf32>,
    } else {
    }
    %c0 = arith.constant 0 : index
    %c0_1 = arith.constant 0 : index
    %3 = vector.load %arg7[%c0, %c0_1] : memref<16x128xf32, #tpu.memory_space<vmem>>, vector<16x128xf32>
    %c0_2 = arith.constant 0 : index
    %c0_3 = arith.constant 0 : index
    %4 = vector.load %arg3[%c0_2, %c0_3] : memref<16x32xf32, #tpu.memory_space<vmem>>, vector<16x32xf32>
    %c0_4 = arith.constant 0 : index
    %c0_5 = arith.constant 0 : index
    %5 = vector.load %arg4[%c0_4, %c0_5] : memref<32x128xf32, #tpu.memory_space<vmem>>, vector<32x128xf32>
    %cst = arith.constant dense<0.000000e+00> : vector<16x128xf32>
    %6 = tpu.matmul %4, %5, %cst {dimension_numbers = #tpu.dot_dimension_numbers<[1], [0], [0], [1], [0, 0, 1, 1], [], []>} : vector<16x32xf32>, vector<32x128xf32>, vector<16x128xf32> -> vector<16x128xf32>
    %7 = arith.addf %3, %6 : vector<16x128xf32>
    %c0_6 = arith.constant 0 : index
    %c0_7 = arith.constant 0 : index
    %8 = vector.load %arg7[%c0_6, %c0_7] : memref<16x128xf32, #tpu.memory_space<vmem>>, vector<16x128xf32>
    tpu.vector_store %arg7[%c0_6, %c0_7], %7 {strides = array<i32>} : memref<16x128xf32, #tpu.memory_space<vmem>>, vector<16x128xf32>,
    %c0_i32_8 = arith.constant 0 : i32
    %9 = arith.cmpi eq, %arg2, %c0_i32_8 : i32
    %10 = arith.extui %9 : i1 to i32
    %c0_i32_9 = arith.constant 0 : i32
    %11 = arith.cmpi ne, %10, %c0_i32_9 : i32
    scf.if %11 {
      %c0_10 = arith.constant 0 : index
      %c0_11 = arith.constant 0 : index
      %12 = vector.load %arg7[%c0_10, %c0_11] : memref<16x128xf32, #tpu.memory_space<vmem>>, vector<16x128xf32>
      %c0_12 = arith.constant 0 : index
      %c0_13 = arith.constant 0 : index
      %13 = vector.load %arg5[%c0_12, %c0_13] : memref<1x128xf32, #tpu.memory_space<vmem>>, vector<1x128xf32>
      %14 = vector.broadcast %13 : vector<1x128xf32> to vector<16x128xf32>
      %15 = arith.addf %12, %14 : vector<16x128xf32>
      %cst_14 = arith.constant 5.000000e-01 : f32
      %16 = vector.broadcast %cst_14 : f32 to vector<16x128xf32>
      %17 = arith.mulf %16, %15 : vector<16x128xf32>
      %cst_15 = arith.constant 0.707106769 : f32
      %18 = vector.broadcast %cst_15 : f32 to vector<16x128xf32>
      %19 = arith.mulf %15, %18 : vector<16x128xf32>
      %20 = math.erf %19 : vector<16x128xf32>
      %cst_16 = arith.constant 1.000000e+00 : f32
      %21 = vector.broadcast %cst_16 : f32 to vector<16x128xf32>
      %22 = arith.addf %21, %20 : vector<16x128xf32>
      %23 = arith.mulf %17, %22 : vector<16x128xf32>
      %c0_17 = arith.constant 0 : index
      %c0_18 = arith.constant 0 : index
      %24 = vector.load %arg6[%c0_17, %c0_18] : memref<16x128xf32, #tpu.memory_space<vmem>>, vector<16x128xf32>
      tpu.vector_store %arg6[%c0_17, %c0_18], %23 {strides = array<i32>} : memref<16x128xf32, #tpu.memory_space<vmem>>, vector<16x128xf32>,
    } else {
    }
    return
  }
  func.func @transform_0(%arg0: i32, %arg1: i32, %arg2: i32) -> (i32, i32) {
    %c0_i32 = arith.constant 0 : i32
    return %arg0, %arg2 : i32, i32
  }
  func.func @transform_1(%arg0: i32, %arg1: i32, %arg2: i32) -> (i32, i32) {
    %c0_i32 = arith.constant 0 : i32
    return %arg2, %arg1 : i32, i32
  }
  func.func @transform_2(%arg0: i32, %arg1: i32, %arg2: i32) -> (i32, i32) {
    %c0_i32 = arith.constant 0 : i32
    %c0_i32_0 = arith.constant 0 : i32
    return %c0_i32, %arg1 : i32, i32
  }
  func.func @transform_3(%arg0: i32, %arg1: i32, %arg2: i32) -> (i32, i32) {
    %c0_i32 = arith.constant 0 : i32
    return %arg0, %arg1 : i32, i32
  }
}

module attributes {stable_mosaic.version = 11 : i64} {
  func.func @_layernorm_kernel(%arg0: i32, %arg1: memref<16x32xf32, #tpu.memory_space<vmem>>, %arg2: memref<1x32xf32, #tpu.memory_space<vmem>>, %arg3: memref<1x32xf32, #tpu.memory_space<vmem>>, %arg4: memref<16x32xf32, #tpu.memory_space<vmem>>) attributes {dimension_semantics = [#tpu.dimension_semantics<parallel>], iteration_bounds = array<i64: 1>, scalar_prefetch = 0 : i64, scratch_operands = 0 : i64, tpu.core_type = #tpu.core_type<tc>, window_params = [{transform_indices = @transform_0, window_bounds = array<i64: 16, 32>}, {pipeline_mode = #tpu.pipeline_mode<synchronous>, transform_indices = @transform_1, window_bounds = array<i64: 1, 32>}, {pipeline_mode = #tpu.pipeline_mode<synchronous>, transform_indices = @transform_2, window_bounds = array<i64: 1, 32>}, {transform_indices = @transform_3, window_bounds = array<i64: 16, 32>}]} {
    %c0 = arith.constant 0 : index
    %c0_0 = arith.constant 0 : index
    %0 = vector.load %arg1[%c0, %c0_0] : memref<16x32xf32, #tpu.memory_space<vmem>>, vector<16x32xf32>
    %cst = arith.constant dense<0.000000e+00> : vector<16xf32>
    %1 = vector.multi_reduction <add>, %0, %cst [1] : vector<16x32xf32> to vector<16xf32>
    %2 = vector.shape_cast %1 : vector<16xf32> to vector<16x1xf32>
    %cst_1 = arith.constant 3.200000e+01 : f32
    %3 = vector.broadcast %cst_1 : f32 to vector<16x1xf32>
    %4 = arith.divf %2, %3 : vector<16x1xf32>
    %5 = vector.broadcast %4 : vector<16x1xf32> to vector<16x32xf32>
    %6 = arith.subf %0, %5 : vector<16x32xf32>
    %7 = arith.mulf %6, %6 : vector<16x32xf32>
    %cst_2 = arith.constant dense<0.000000e+00> : vector<16xf32>
    %8 = vector.multi_reduction <add>, %7, %cst_2 [1] : vector<16x32xf32> to vector<16xf32>
    %9 = vector.shape_cast %8 : vector<16xf32> to vector<16x1xf32>
    %cst_3 = arith.constant 3.200000e+01 : f32
    %10 = vector.broadcast %cst_3 : f32 to vector<16x1xf32>
    %11 = arith.divf %9, %10 : vector<16x1xf32>
    %12 = vector.broadcast %4 : vector<16x1xf32> to vector<16x32xf32>
    %13 = arith.subf %0, %12 : vector<16x32xf32>
    %cst_4 = arith.constant 9.99999974E-6 : f32
    %14 = vector.broadcast %cst_4 : f32 to vector<16x1xf32>
    %15 = arith.addf %11, %14 : vector<16x1xf32>
    %16 = math.rsqrt %15 : vector<16x1xf32>
    %17 = vector.broadcast %16 : vector<16x1xf32> to vector<16x32xf32>
    %18 = arith.mulf %13, %17 : vector<16x32xf32>
    %c0_5 = arith.constant 0 : index
    %c0_6 = arith.constant 0 : index
    %19 = vector.load %arg2[%c0_5, %c0_6] : memref<1x32xf32, #tpu.memory_space<vmem>>, vector<1x32xf32>
    %20 = vector.broadcast %19 : vector<1x32xf32> to vector<16x32xf32>
    %21 = arith.mulf %18, %20 : vector<16x32xf32>
    %c0_7 = arith.constant 0 : index
    %c0_8 = arith.constant 0 : index
    %22 = vector.load %arg3[%c0_7, %c0_8] : memref<1x32xf32, #tpu.memory_space<vmem>>, vector<1x32xf32>
    %23 = vector.broadcast %22 : vector<1x32xf32> to vector<16x32xf32>
    %24 = arith.addf %21, %23 : vector<16x32xf32>
    %c0_9 = arith.constant 0 : index
    %c0_10 = arith.constant 0 : index
    %25 = vector.load %arg4[%c0_9, %c0_10] : memref<16x32xf32, #tpu.memory_space<vmem>>, vector<16x32xf32>
    tpu.vector_store %arg4[%c0_9, %c0_10], %24 {strides = array<i32>} : memref<16x32xf32, #tpu.memory_space<vmem>>, vector<16x32xf32>,
    return
  }
  func.func @transform_0(%arg0: i32) -> (i32, i32) {
    %c0_i32 = arith.constant 0 : i32
    %c0_i32_0 = arith.constant 0 : i32
    return %arg0, %c0_i32 : i32, i32
  }
  func.func @transform_1(%arg0: i32) -> (i32, i32) {
    %c0_i32 = arith.constant 0 : i32
    %c0_i32_0 = arith.constant 0 : i32
    %c0_i32_1 = arith.constant 0 : i32
    return %c0_i32, %c0_i32_0 : i32, i32
  }
  func.func @transform_2(%arg0: i32) -> (i32, i32) {
    %c0_i32 = arith.constant 0 : i32
    %c0_i32_0 = arith.constant 0 : i32
    %c0_i32_1 = arith.constant 0 : i32
    return %c0_i32, %c0_i32_0 : i32, i32
  }
  func.func @transform_3(%arg0: i32) -> (i32, i32) {
    %c0_i32 = arith.constant 0 : i32
    %c0_i32_0 = arith.constant 0 : i32
    return %arg0, %c0_i32 : i32, i32
  }
}

module attributes {stable_mosaic.version = 11 : i64} {
  func.func @kernel(%arg0: i32, %arg1: i32, %arg2: i32, %arg3: memref<16x32xf32, #tpu.memory_space<vmem>>, %arg4: memref<32x64xf32, #tpu.memory_space<vmem>>, %arg5: memref<16x64xf32, #tpu.memory_space<vmem>>, %arg6: memref<16x64xf32, #tpu.memory_space<vmem>>) attributes {dimension_semantics = [#tpu.dimension_semantics<parallel>, #tpu.dimension_semantics<parallel>, #tpu.dimension_semantics<arbitrary>], iteration_bounds = array<i64: 1, 1, 1>, scalar_prefetch = 0 : i64, scratch_operands = 1 : i64, tpu.core_type = #tpu.core_type<tc>, window_params = [{transform_indices = @transform_0, window_bounds = array<i64: 16, 32>}, {transform_indices = @transform_1, window_bounds = array<i64: 32, 64>}, {transform_indices = @transform_2, window_bounds = array<i64: 16, 64>}]} {
    %c0_i32 = arith.constant 0 : i32
    %0 = arith.cmpi eq, %arg2, %c0_i32 : i32
    %1 = arith.extui %0 : i1 to i32
    %c0_i32_0 = arith.constant 0 : i32
    %2 = arith.cmpi ne, %1, %c0_i32_0 : i32
    scf.if %2 {
      %cst_10 = arith.constant 0.000000e+00 : f32
      %12 = vector.broadcast %cst_10 : f32 to vector<16x64xf32>
      %c0_11 = arith.constant 0 : index
      %c0_12 = arith.constant 0 : index
      %13 = vector.load %arg6[%c0_11, %c0_12] : memref<16x64xf32, #tpu.memory_space<vmem>>, vector<16x64xf32>
      tpu.vector_store %arg6[%c0_11, %c0_12], %12 {strides = array<i32>} : memref<16x64xf32, #tpu.memory_space<vmem>>, vector<16x64xf32>,
    } else {
    }
    %c0 = arith.constant 0 : index
    %c0_1 = arith.constant 0 : index
    %3 = vector.load %arg6[%c0, %c0_1] : memref<16x64xf32, #tpu.memory_space<vmem>>, vector<16x64xf32>
    %c0_2 = arith.constant 0 : index
    %c0_3 = arith.constant 0 : index
    %4 = vector.load %arg3[%c0_2, %c0_3] : memref<16x32xf32, #tpu.memory_space<vmem>>, vector<16x32xf32>
    %c0_4 = arith.constant 0 : index
    %c0_5 = arith.constant 0 : index
    %5 = vector.load %arg4[%c0_4, %c0_5] : memref<32x64xf32, #tpu.memory_space<vmem>>, vector<32x64xf32>
    %cst = arith.constant dense<0.000000e+00> : vector<16x64xf32>
    %6 = tpu.matmul %4, %5, %cst {dimension_numbers = #tpu.dot_dimension_numbers<[1], [0], [0], [1], [0, 0, 1, 1], [], []>} : vector<16x32xf32>, vector<32x64xf32>, vector<16x64xf32> -> vector<16x64xf32>
    %7 = arith.addf %3, %6 : vector<16x64xf32>
    %c0_6 = arith.constant 0 : index
    %c0_7 = arith.constant 0 : index
    %8 = vector.load %arg6[%c0_6, %c0_7] : memref<16x64xf32, #tpu.memory_space<vmem>>, vector<16x64xf32>
    tpu.vector_store %arg6[%c0_6, %c0_7], %7 {strides = array<i32>} : memref<16x64xf32, #tpu.memory_space<vmem>>, vector<16x64xf32>,
    %c0_i32_8 = arith.constant 0 : i32
    %9 = arith.cmpi eq, %arg2, %c0_i32_8 : i32
    %10 = arith.extui %9 : i1 to i32
    %c0_i32_9 = arith.constant 0 : i32
    %11 = arith.cmpi ne, %10, %c0_i32_9 : i32
    scf.if %11 {
      %c0_10 = arith.constant 0 : index
      %c0_11 = arith.constant 0 : index
      %12 = vector.load %arg6[%c0_10, %c0_11] : memref<16x64xf32, #tpu.memory_space<vmem>>, vector<16x64xf32>
      %c0_12 = arith.constant 0 : index
      %c0_13 = arith.constant 0 : index
      %13 = vector.load %arg5[%c0_12, %c0_13] : memref<16x64xf32, #tpu.memory_space<vmem>>, vector<16x64xf32>
      tpu.vector_store %arg5[%c0_12, %c0_13], %12 {strides = array<i32>} : memref<16x64xf32, #tpu.memory_space<vmem>>, vector<16x64xf32>,
    } else {
    }
    return
  }
  func.func @transform_0(%arg0: i32, %arg1: i32, %arg2: i32) -> (i32, i32) {
    %c0_i32 = arith.constant 0 : i32
    return %arg0, %arg2 : i32, i32
  }
  func.func @transform_1(%arg0: i32, %arg1: i32, %arg2: i32) -> (i32, i32) {
    %c0_i32 = arith.constant 0 : i32
    return %arg2, %arg1 : i32, i32
  }
  func.func @transform_2(%arg0: i32, %arg1: i32, %arg2: i32) -> (i32, i32) {
    %c0_i32 = arith.constant 0 : i32
    return %arg0, %arg1 : i32, i32
  }
}

module attributes {stable_mosaic.version = 11 : i64} {
  func.func @_matmul_res_ln_kernel(%arg0: i32, %arg1: i32, %arg2: memref<16x128xf32, #tpu.memory_space<vmem>>, %arg3: memref<128x32xf32, #tpu.memory_space<vmem>>, %arg4: memref<1x32xf32, #tpu.memory_space<vmem>>, %arg5: memref<16x32xf32, #tpu.memory_space<vmem>>, %arg6: memref<1x32xf32, #tpu.memory_space<vmem>>, %arg7: memref<1x32xf32, #tpu.memory_space<vmem>>, %arg8: memref<16x32xf32, #tpu.memory_space<vmem>>, %arg9: memref<16x32xf32, #tpu.memory_space<vmem>>) attributes {dimension_semantics = [#tpu.dimension_semantics<parallel>, #tpu.dimension_semantics<arbitrary>], iteration_bounds = array<i64: 1, 1>, scalar_prefetch = 0 : i64, scratch_operands = 1 : i64, tpu.core_type = #tpu.core_type<tc>, window_params = [{transform_indices = @transform_0, window_bounds = array<i64: 16, 128>}, {transform_indices = @transform_1, window_bounds = array<i64: 128, 32>}, {pipeline_mode = #tpu.pipeline_mode<synchronous>, transform_indices = @transform_2, window_bounds = array<i64: 1, 32>}, {transform_indices = @transform_3, window_bounds = array<i64: 16, 32>}, {pipeline_mode = #tpu.pipeline_mode<synchronous>, transform_indices = @transform_4, window_bounds = array<i64: 1, 32>}, {pipeline_mode = #tpu.pipeline_mode<synchronous>, transform_indices = @transform_5, window_bounds = array<i64: 1, 32>}, {transform_indices = @transform_6, window_bounds = array<i64: 16, 32>}]} {
    %c0_i32 = arith.constant 0 : i32
    %0 = arith.cmpi eq, %arg1, %c0_i32 : i32
    %1 = arith.extui %0 : i1 to i32
    %c0_i32_0 = arith.constant 0 : i32
    %2 = arith.cmpi ne, %1, %c0_i32_0 : i32
    scf.if %2 {
      %cst_10 = arith.constant 0.000000e+00 : f32
      %12 = vector.broadcast %cst_10 : f32 to vector<16x32xf32>
      %c0_11 = arith.constant 0 : index
      %c0_12 = arith.constant 0 : index
      %13 = vector.load %arg9[%c0_11, %c0_12] : memref<16x32xf32, #tpu.memory_space<vmem>>, vector<16x32xf32>
      tpu.vector_store %arg9[%c0_11, %c0_12], %12 {strides = array<i32>} : memref<16x32xf32, #tpu.memory_space<vmem>>, vector<16x32xf32>,
    } else {
    }
    %c0 = arith.constant 0 : index
    %c0_1 = arith.constant 0 : index
    %3 = vector.load %arg9[%c0, %c0_1] : memref<16x32xf32, #tpu.memory_space<vmem>>, vector<16x32xf32>
    %c0_2 = arith.constant 0 : index
    %c0_3 = arith.constant 0 : index
    %4 = vector.load %arg2[%c0_2, %c0_3] : memref<16x128xf32, #tpu.memory_space<vmem>>, vector<16x128xf32>
    %c0_4 = arith.constant 0 : index
    %c0_5 = arith.constant 0 : index
    %5 = vector.load %arg3[%c0_4, %c0_5] : memref<128x32xf32, #tpu.memory_space<vmem>>, vector<128x32xf32>
    %cst = arith.constant dense<0.000000e+00> : vector<16x32xf32>
    %6 = tpu.matmul %4, %5, %cst {dimension_numbers = #tpu.dot_dimension_numbers<[1], [0], [0], [1], [0, 0, 1, 1], [], []>} : vector<16x128xf32>, vector<128x32xf32>, vector<16x32xf32> -> vector<16x32xf32>
    %7 = arith.addf %3, %6 : vector<16x32xf32>
    %c0_6 = arith.constant 0 : index
    %c0_7 = arith.constant 0 : index
    %8 = vector.load %arg9[%c0_6, %c0_7] : memref<16x32xf32, #tpu.memory_space<vmem>>, vector<16x32xf32>
    tpu.vector_store %arg9[%c0_6, %c0_7], %7 {strides = array<i32>} : memref<16x32xf32, #tpu.memory_space<vmem>>, vector<16x32xf32>,
    %c0_i32_8 = arith.constant 0 : i32
    %9 = arith.cmpi eq, %arg1, %c0_i32_8 : i32
    %10 = arith.extui %9 : i1 to i32
    %c0_i32_9 = arith.constant 0 : i32
    %11 = arith.cmpi ne, %10, %c0_i32_9 : i32
    scf.if %11 {
      %c0_10 = arith.constant 0 : index
      %c0_11 = arith.constant 0 : index
      %12 = vector.load %arg9[%c0_10, %c0_11] : memref<16x32xf32, #tpu.memory_space<vmem>>, vector<16x32xf32>
      %c0_12 = arith.constant 0 : index
      %c0_13 = arith.constant 0 : index
      %13 = vector.load %arg4[%c0_12, %c0_13] : memref<1x32xf32, #tpu.memory_space<vmem>>, vector<1x32xf32>
      %14 = vector.broadcast %13 : vector<1x32xf32> to vector<16x32xf32>
      %15 = arith.addf %12, %14 : vector<16x32xf32>
      %c0_14 = arith.constant 0 : index
      %c0_15 = arith.constant 0 : index
      %16 = vector.load %arg5[%c0_14, %c0_15] : memref<16x32xf32, #tpu.memory_space<vmem>>, vector<16x32xf32>
      %17 = arith.addf %15, %16 : vector<16x32xf32>
      %cst_16 = arith.constant dense<0.000000e+00> : vector<16xf32>
      %18 = vector.multi_reduction <add>, %17, %cst_16 [1] : vector<16x32xf32> to vector<16xf32>
      %19 = vector.shape_cast %18 : vector<16xf32> to vector<16x1xf32>
      %cst_17 = arith.constant 3.200000e+01 : f32
      %20 = vector.broadcast %cst_17 : f32 to vector<16x1xf32>
      %21 = arith.divf %19, %20 : vector<16x1xf32>
      %22 = vector.broadcast %21 : vector<16x1xf32> to vector<16x32xf32>
      %23 = arith.subf %17, %22 : vector<16x32xf32>
      %24 = arith.mulf %23, %23 : vector<16x32xf32>
      %cst_18 = arith.constant dense<0.000000e+00> : vector<16xf32>
      %25 = vector.multi_reduction <add>, %24, %cst_18 [1] : vector<16x32xf32> to vector<16xf32>
      %26 = vector.shape_cast %25 : vector<16xf32> to vector<16x1xf32>
      %cst_19 = arith.constant 3.200000e+01 : f32
      %27 = vector.broadcast %cst_19 : f32 to vector<16x1xf32>
      %28 = arith.divf %26, %27 : vector<16x1xf32>
      %29 = vector.broadcast %21 : vector<16x1xf32> to vector<16x32xf32>
      %30 = arith.subf %17, %29 : vector<16x32xf32>
      %cst_20 = arith.constant 9.99999974E-6 : f32
      %31 = vector.broadcast %cst_20 : f32 to vector<16x1xf32>
      %32 = arith.addf %28, %31 : vector<16x1xf32>
      %33 = math.rsqrt %32 : vector<16x1xf32>
      %34 = vector.broadcast %33 : vector<16x1xf32> to vector<16x32xf32>
      %35 = arith.mulf %30, %34 : vector<16x32xf32>
      %c0_21 = arith.constant 0 : index
      %c0_22 = arith.constant 0 : index
      %36 = vector.load %arg6[%c0_21, %c0_22] : memref<1x32xf32, #tpu.memory_space<vmem>>, vector<1x32xf32>
      %37 = vector.broadcast %36 : vector<1x32xf32> to vector<16x32xf32>
      %38 = arith.mulf %35, %37 : vector<16x32xf32>
      %c0_23 = arith.constant 0 : index
      %c0_24 = arith.constant 0 : index
      %39 = vector.load %arg7[%c0_23, %c0_24] : memref<1x32xf32, #tpu.memory_space<vmem>>, vector<1x32xf32>
      %40 = vector.broadcast %39 : vector<1x32xf32> to vector<16x32xf32>
      %41 = arith.addf %38, %40 : vector<16x32xf32>
      %c0_25 = arith.constant 0 : index
      %c0_26 = arith.constant 0 : index
      %42 = vector.load %arg8[%c0_25, %c0_26] : memref<16x32xf32, #tpu.memory_space<vmem>>, vector<16x32xf32>
      tpu.vector_store %arg8[%c0_25, %c0_26], %41 {strides = array<i32>} : memref<16x32xf32, #tpu.memory_space<vmem>>, vector<16x32xf32>,
    } else {
    }
    return
  }
  func.func @transform_0(%arg0: i32, %arg1: i32) -> (i32, i32) {
    %c0_i32 = arith.constant 0 : i32
    return %arg0, %arg1 : i32, i32
  }
  func.func @transform_1(%arg0: i32, %arg1: i32) -> (i32, i32) {
    %c0_i32 = arith.constant 0 : i32
    %c0_i32_0 = arith.constant 0 : i32
    return %arg1, %c0_i32 : i32, i32
  }
  func.func @transform_2(%arg0: i32, %arg1: i32) -> (i32, i32) {
    %c0_i32 = arith.constant 0 : i32
    %c0_i32_0 = arith.constant 0 : i32
    %c0_i32_1 = arith.constant 0 : i32
    return %c0_i32, %c0_i32_0 : i32, i32
  }
  func.func @transform_3(%arg0: i32, %arg1: i32) -> (i32, i32) {
    %c0_i32 = arith.constant 0 : i32
    %c0_i32_0 = arith.constant 0 : i32
    return %arg0, %c0_i32 : i32, i32
  }
  func.func @transform_4(%arg0: i32, %arg1: i32) -> (i32, i32) {
    %c0_i32 = arith.constant 0 : i32
    %c0_i32_0 = arith.constant 0 : i32
    %c0_i32_1 = arith.constant 0 : i32
    return %c0_i32, %c0_i32_0 : i32, i32
  }
  func.func @transform_5(%arg0: i32, %arg1: i32) -> (i32, i32) {
    %c0_i32 = arith.constant 0 : i32
    %c0_i32_0 = arith.constant 0 : i32
    %c0_i32_1 = arith.constant 0 : i32
    return %c0_i32, %c0_i32_0 : i32, i32
  }
  func.func @transform_6(%arg0: i32, %arg1: i32) -> (i32, i32) {
    %c0_i32 = arith.constant 0 : i32
    %c0_i32_0 = arith.constant 0 : i32
    return %arg0, %c0_i32 : i32, i32
  }
}

</mosaic_0001>

<llo_original>
// kernel: _lambda_.15
$region0: #{_lambda_.15}
  #allocation0 [shape = 'u32[]', space=smem, size = 0x4, offset = 0x4, fixed_abs, tag = 'smem constant byte address 0x4 - core index']
  #allocation1 [shape = 'u32[144,128]{1,0:T(1,128)}', space=vmem, size = 0x12000, scoped, tag = 'internal scratch']
  #allocation2 [shape = 'f32[16,128]{1,0:T(8,128)}', space=vmem, size = 0x2000, scoped, tag = 'scratch operand']
  %s0 = inlined_call_operand.vmem [shape: f32[16,32], index: 0, kind: input, shape index: {}]
  %s1 = inlined_call_operand.vmem [shape: f32[32,128], index: 1, kind: input, shape index: {}]
  %s2 = inlined_call_operand.vmem [shape: f32[1,128], index: 2, kind: input, shape index: {}]
  %s3 = inlined_call_operand.vmem [shape: f32[16,128], index: 3, kind: output, shape index: {}]
  %s4 = sld [smem:[#allocation0]]
  $region30: #{_lambda_.15} parent=0
    _
  %s6 = ssub.s32 1, %s4
  %s7 = scalar_select 0, %s6, %s4
  // Predicated region
  $region2: #{_lambda_.15} parent=0 // pred_check
    _
  $region3: #{_lambda_.15} parent=0 // pred_check_branch
    %9 = sbr.rel (0) target = $region5
  $region4: #{_lambda_.15} parent=0 // pred_region
    _
  $region5: #{_lambda_.15} parent=0 // pred_fallthru
    _
  // Predicated region
  $region6: #{_lambda_.15} parent=0 // pred_check
    _
  $region7: #{_lambda_.15} parent=0 // pred_check_branch
    %11 = sbr.rel (0) target = $region9
  $region8: #{_lambda_.15} parent=0 // pred_region
    _
  $region9: #{_lambda_.15} parent=0 // pred_fallthru
    _
  // Predicated region
  $region10: #{_lambda_.15} parent=0 // pred_check
    _
  $region11: #{_lambda_.15} parent=0 // pred_check_branch
    %13 = sbr.rel (0) target = $region13
  $region12: #{_lambda_.15} parent=0 // pred_region
    _
  $region13: #{_lambda_.15} parent=0 // pred_fallthru
    _
  %p14 = scmp.eq.s32.totalorder 0, 0
  // Predicated region
  $region14: #{_lambda_.15} parent=0 // pred_check
    %p15 = pneg %p14
  $region15: #{_lambda_.15} parent=0 // pred_check_branch
    %17 = sbr.rel (%p15) target = $region17
  $region16: #{_lambda_.15} parent=0 // pred_region
    %18 = vst [vmem:[#allocation2] sm:$0xff] 0.0
    %19 = vst [vmem:[#allocation2 + $0x8] sm:$0xff] 0.0
  $region17: #{_lambda_.15} parent=0 // pred_fallthru
    _
  %v20 = vld [vmem:[#allocation2] sm:$0xff]
  %v21 = vld [vmem:[#allocation2 + $0x8] sm:$0xff]
  %v22 = vld [vmem:[%s0] sm:$0xff]
  %v23 = vld [vmem:[%s0 + $0x8] sm:$0xff]
  %v24 = vld [vmem:[%s1] sm:$0xff]
  %v25 = vld [vmem:[%s1 + $0x8] sm:$0xff]
  %v26 = vld [vmem:[%s1 + $0x10] sm:$0xff]
  %v27 = vld [vmem:[%s1 + $0x18] sm:$0xff]
  %vm28 = vcmask 261120
  %v30 = vsel %vm28, %v22, 0
  %v33 = vsel %vm28, %v23, 0
  %35 = vmatprep.subr.mxu0 0.0
  %36 = vmatpush1.msra.mxu0 %v24
  %37 = vmatprep.subr.mxu0 0.0
  %38 = vmatpush1.msra.mxu0 %v25
  %39 = vmatprep.subr.mxu0 0.0
  %40 = vmatpush1.msra.mxu0 %v26
  %41 = vmatprep.subr.mxu0 0.0
  %42 = vmatpush1.msra.mxu0 %v27
  %43 = vmatprep.subr.mxu0 0.0
  %44 = vmatpush1.msra.mxu0 0.0
  %45 = vmatprep.subr.mxu0 0.0
  %46 = vmatpush1.msra.mxu0 0.0
  %47 = vmatprep.subr.mxu0 0.0
  %48 = vmatpush1.msra.mxu0 0.0
  %49 = vmatprep.subr.mxu0 0.0
  %50 = vmatpush1.msra.mxu0 0.0
  %51 = vmatprep.subr.mxu0 0.0
  %52 = vmatpush1.msra.mxu0 0.0
  %53 = vmatprep.subr.mxu0 0.0
  %54 = vmatpush1.msra.mxu0 0.0
  %55 = vmatprep.subr.mxu0 0.0
  %56 = vmatpush1.msra.mxu0 0.0
  %57 = vmatprep.subr.mxu0 0.0
  %58 = vmatpush1.msra.mxu0 0.0
  %59 = vmatprep.subr.mxu0 0.0
  %60 = vmatpush1.msra.mxu0 0.0
  %61 = vmatprep.subr.mxu0 0.0
  %62 = vmatpush1.msra.mxu0 0.0
  %63 = vmatprep.subr.mxu0 0.0
  %64 = vmatpush1.msra.mxu0 0.0
  %65 = vmatprep.subr.mxu0 0.0
  %66 = vmatpush1.msra.mxu0 0.0
  %67 = vmatprep.subr.mxu0 0.0
  %68 = vmatpush1.msra.mxu0 0.0
  %69 = vmatprep.subr.mxu0 0.0
  %70 = vmatpush1.msra.mxu0 0.0
  %71 = vmatprep.subr.mxu0 0.0
  %72 = vmatpush1.msra.mxu0 0.0
  %73 = vmatprep.subr.mxu0 0.0
  %74 = vmatpush1.msra.mxu0 0.0
  %75 = vmatprep.subr.mxu0 0.0
  %76 = vmatpush1.msra.mxu0 0.0
  %77 = vmatprep.subr.mxu0 0.0
  %78 = vmatpush1.msra.mxu0 0.0
  %79 = vmatprep.subr.mxu0 0.0
  %80 = vmatpush1.msra.mxu0 0.0
  %81 = vmatprep.subr.mxu0 0.0
  %82 = vmatpush1.msra.mxu0 0.0
  %83 = vmatprep.subr.mxu0 0.0
  %84 = vmatpush1.msra.mxu0 0.0
  %85 = vmatprep.subr.mxu0 0.0
  %86 = vmatpush1.msra.mxu0 0.0
  %87 = vmatprep.subr.mxu0 0.0
  %88 = vmatpush1.msra.mxu0 0.0
  %89 = vmatprep.subr.mxu0 0.0
  %90 = vmatpush1.msra.mxu0 0.0
  %91 = vmatprep.subr.mxu0 0.0
  %92 = vmatpush1.msra.mxu0 0.0
  %93 = vmatprep.subr.mxu0 0.0
  %94 = vmatpush1.msra.mxu0 0.0
  %95 = vmatprep.subr.mxu0 0.0
  %96 = vmatpush1.msra.mxu0 0.0
  %97 = vmatprep.subr.mxu0 0.0
  %98 = vmatpush1.msra.mxu0 0.0
  %99 = vmatprep.mubr.f32.mxu0 0.0
  %100 = vmatmul.mubr.f32.gmra.mrb[0].mxu0 %v30
  %v101 = vpop.f32.mrb[0].mxu0
  %v102 = vadd.f32 0.0, %v101
  %v103 = vpop.f32.mrb[0].mxu0
  %104 = vmatprep.mubr.f32.mxu0 0.0
  %105 = vmatmul.mubr.f32.gmra.mrb[0].mxu0 %v33
  %v106 = vpop.f32.mrb[0].mxu0
  %v107 = vadd.f32 0.0, %v106
  %v108 = vpop.f32.mrb[0].mxu0
  %109 = vdwg.mxu0
  %v110 = vadd.f32 %v20, %v102
  %v111 = vadd.f32 %v21, %v107
  %112 = vst [vmem:[#allocation2] sm:$0xff] %v110
  %113 = vst [vmem:[#allocation2 + $0x8] sm:$0xff] %v111
  // Predicated region
  $region18: #{_lambda_.15} parent=0 // pred_check
    %p114 = pneg %p14
  $region19: #{_lambda_.15} parent=0 // pred_check_branch
    %116 = sbr.rel (%p114) target = $region21
  $region20: #{_lambda_.15} parent=0 // pred_region
    %v117 = vld [vmem:[#allocation2] sm:$0xff]
    %v118 = vld [vmem:[#allocation2 + $0x8] sm:$0xff]
    %v119 = vld [vmem:[%s2] sm:$0x1]
    %v121 = vlaneseq
    %v122 = vshrl.u32 %v121, 7
    %v123 = vsub.s32 0, %v122
    %v124 = vrot.slane %v119, %v123
    %v126 = vadd.f32 %v117, %v124
    %v127 = vadd.f32 %v118, %v124
    %v128 = vmul.f32 %v126, 0.5
    %v129 = vmul.f32 %v127, 0.5
    %v130 = vmul.f32 %v126, 0.70710677
    %v131 = vmul.f32 %v127, 0.70710677
    %v132 = verf.f32.pop %v130
    %v133 = verf.f32.pop %v131
    %v134 = vadd.f32 %v132, 1.0
    %v135 = vadd.f32 %v133, 1.0
    %v136 = vmul.f32 %v128, %v134
    %v137 = vmul.f32 %v129, %v135
    %138 = vst [vmem:[%s3] sm:$0xff] %v136
    %139 = vst [vmem:[%s3 + $0x8] sm:$0xff] %v137
  $region21: #{_lambda_.15} parent=0 // pred_fallthru
    _
  // Predicated region
  $region22: #{_lambda_.15} parent=0 // pred_check
    _
  $region23: #{_lambda_.15} parent=0 // pred_check_branch
    %141 = sbr.rel (0) target = $region25
  $region24: #{_lambda_.15} parent=0 // pred_region
    _
  $region25: #{_lambda_.15} parent=0 // pred_fallthru
    _
  // Predicated region
  $region26: #{_lambda_.15} parent=0 // pred_check
    _
  $region27: #{_lambda_.15} parent=0 // pred_check_branch
    %143 = sbr.rel (0) target = $region29
  $region28: #{_lambda_.15} parent=0 // pred_region
    _
  $region29: #{_lambda_.15} parent=0 // pred_fallthru
    _

// kernel: _lambda_.12
$region0: #{_lambda_.12}
  #allocation0 [shape = 'u32[]', space=smem, size = 0x4, offset = 0x4, fixed_abs, tag = 'smem constant byte address 0x4 - core index']
  #allocation1 [shape = 'u32[144,128]{1,0:T(1,128)}', space=vmem, size = 0x12000, scoped, tag = 'internal scratch']
  #allocation2 [shape = 'f32[16,96]{1,0:T(8,128)}', space=vmem, size = 0x2000, scoped, tag = 'scratch operand']
  %s0 = inlined_call_operand.vmem [shape: f32[16,32], index: 0, kind: input, shape index: {}]
  %s1 = inlined_call_operand.vmem [shape: f32[32,96], index: 1, kind: input, shape index: {}]
  %s2 = inlined_call_operand.vmem [shape: f32[16,96], index: 2, kind: output, shape index: {}]
  %s3 = sld [smem:[#allocation0]]
  $region26: #{_lambda_.12} parent=0
    _
  %s5 = ssub.s32 1, %s3
  %s6 = scalar_select 0, %s5, %s3
  // Predicated region
  $region2: #{_lambda_.12} parent=0 // pred_check
    _
  $region3: #{_lambda_.12} parent=0 // pred_check_branch
    %8 = sbr.rel (0) target = $region5
  $region4: #{_lambda_.12} parent=0 // pred_region
    _
  $region5: #{_lambda_.12} parent=0 // pred_fallthru
    _
  // Predicated region
  $region6: #{_lambda_.12} parent=0 // pred_check
    _
  $region7: #{_lambda_.12} parent=0 // pred_check_branch
    %10 = sbr.rel (0) target = $region9
  $region8: #{_lambda_.12} parent=0 // pred_region
    _
  $region9: #{_lambda_.12} parent=0 // pred_fallthru
    _
  %p11 = scmp.eq.s32.totalorder 0, 0
  // Predicated region
  $region10: #{_lambda_.12} parent=0 // pred_check
    %p12 = pneg %p11
  $region11: #{_lambda_.12} parent=0 // pred_check_branch
    %14 = sbr.rel (%p12) target = $region13
  $region12: #{_lambda_.12} parent=0 // pred_region
    %vm15 = vcmask 785408
    %16 = vst.msk [vmem:[#allocation2] sm:$0xff] %vm15, 0.0
    %17 = vst.msk [vmem:[#allocation2 + $0x8] sm:$0xff] %vm15, 0.0
  $region13: #{_lambda_.12} parent=0 // pred_fallthru
    _
  %v18 = vld [vmem:[#allocation2] sm:$0xff]
  %v19 = vld [vmem:[#allocation2 + $0x8] sm:$0xff]
  %v20 = vld [vmem:[%s0] sm:$0xff]
  %v21 = vld [vmem:[%s0 + $0x8] sm:$0xff]
  %v22 = vld [vmem:[%s1] sm:$0xff]
  %v23 = vld [vmem:[%s1 + $0x8] sm:$0xff]
  %v24 = vld [vmem:[%s1 + $0x10] sm:$0xff]
  %v25 = vld [vmem:[%s1 + $0x18] sm:$0xff]
  %vm26 = vcmask 261120
  %v28 = vsel %vm26, %v20, 0
  %v31 = vsel %vm26, %v21, 0
  %33 = vmatprep.subr.mxu0 0.0
  %34 = vmatpush1.msra.mxu0 %v22
  %35 = vmatprep.subr.mxu0 0.0
  %36 = vmatpush1.msra.mxu0 %v23
  %37 = vmatprep.subr.mxu0 0.0
  %38 = vmatpush1.msra.mxu0 %v24
  %39 = vmatprep.subr.mxu0 0.0
  %40 = vmatpush1.msra.mxu0 %v25
  %41 = vmatprep.subr.mxu0 0.0
  %42 = vmatpush1.msra.mxu0 0.0
  %43 = vmatprep.subr.mxu0 0.0
  %44 = vmatpush1.msra.mxu0 0.0
  %45 = vmatprep.subr.mxu0 0.0
  %46 = vmatpush1.msra.mxu0 0.0
  %47 = vmatprep.subr.mxu0 0.0
  %48 = vmatpush1.msra.mxu0 0.0
  %49 = vmatprep.subr.mxu0 0.0
  %50 = vmatpush1.msra.mxu0 0.0
  %51 = vmatprep.subr.mxu0 0.0
  %52 = vmatpush1.msra.mxu0 0.0
  %53 = vmatprep.subr.mxu0 0.0
  %54 = vmatpush1.msra.mxu0 0.0
  %55 = vmatprep.subr.mxu0 0.0
  %56 = vmatpush1.msra.mxu0 0.0
  %57 = vmatprep.subr.mxu0 0.0
  %58 = vmatpush1.msra.mxu0 0.0
  %59 = vmatprep.subr.mxu0 0.0
  %60 = vmatpush1.msra.mxu0 0.0
  %61 = vmatprep.subr.mxu0 0.0
  %62 = vmatpush1.msra.mxu0 0.0
  %63 = vmatprep.subr.mxu0 0.0
  %64 = vmatpush1.msra.mxu0 0.0
  %65 = vmatprep.subr.mxu0 0.0
  %66 = vmatpush1.msra.mxu0 0.0
  %67 = vmatprep.subr.mxu0 0.0
  %68 = vmatpush1.msra.mxu0 0.0
  %69 = vmatprep.subr.mxu0 0.0
  %70 = vmatpush1.msra.mxu0 0.0
  %71 = vmatprep.subr.mxu0 0.0
  %72 = vmatpush1.msra.mxu0 0.0
  %73 = vmatprep.subr.mxu0 0.0
  %74 = vmatpush1.msra.mxu0 0.0
  %75 = vmatprep.subr.mxu0 0.0
  %76 = vmatpush1.msra.mxu0 0.0
  %77 = vmatprep.subr.mxu0 0.0
  %78 = vmatpush1.msra.mxu0 0.0
  %79 = vmatprep.subr.mxu0 0.0
  %80 = vmatpush1.msra.mxu0 0.0
  %81 = vmatprep.subr.mxu0 0.0
  %82 = vmatpush1.msra.mxu0 0.0
  %83 = vmatprep.subr.mxu0 0.0
  %84 = vmatpush1.msra.mxu0 0.0
  %85 = vmatprep.subr.mxu0 0.0
  %86 = vmatpush1.msra.mxu0 0.0
  %87 = vmatprep.subr.mxu0 0.0
  %88 = vmatpush1.msra.mxu0 0.0
  %89 = vmatprep.subr.mxu0 0.0
  %90 = vmatpush1.msra.mxu0 0.0
  %91 = vmatprep.subr.mxu0 0.0
  %92 = vmatpush1.msra.mxu0 0.0
  %93 = vmatprep.subr.mxu0 0.0
  %94 = vmatpush1.msra.mxu0 0.0
  %95 = vmatprep.subr.mxu0 0.0
  %96 = vmatpush1.msra.mxu0 0.0
  %97 = vmatprep.mubr.f32.mxu0 0.0
  %98 = vmatmul.mubr.f32.gmra.mrb[0].mxu0 %v28
  %v99 = vpop.f32.mrb[0].mxu0
  %v100 = vadd.f32 0.0, %v99
  %v101 = vpop.f32.mrb[0].mxu0
  %102 = vmatprep.mubr.f32.mxu0 0.0
  %103 = vmatmul.mubr.f32.gmra.mrb[0].mxu0 %v31
  %v104 = vpop.f32.mrb[0].mxu0
  %v105 = vadd.f32 0.0, %v104
  %v106 = vpop.f32.mrb[0].mxu0
  %107 = vdwg.mxu0
  %v108 = vadd.f32 %v18, %v100
  %v109 = vadd.f32 %v19, %v105
  %vm110 = vcmask 785408
  %111 = vst.msk [vmem:[#allocation2] sm:$0xff] %vm110, %v108
  %112 = vst.msk [vmem:[#allocation2 + $0x8] sm:$0xff] %vm110, %v109
  // Predicated region
  $region14: #{_lambda_.12} parent=0 // pred_check
    %p113 = pneg %p11
  $region15: #{_lambda_.12} parent=0 // pred_check_branch
    %115 = sbr.rel (%p113) target = $region17
  $region16: #{_lambda_.12} parent=0 // pred_region
    %v116 = vld [vmem:[#allocation2] sm:$0xff]
    %v117 = vld [vmem:[#allocation2 + $0x8] sm:$0xff]
    %118 = vst.msk [vmem:[%s2] sm:$0xff] %vm110, %v116
    %119 = vst.msk [vmem:[%s2 + $0x8] sm:$0xff] %vm110, %v117
  $region17: #{_lambda_.12} parent=0 // pred_fallthru
    _
  // Predicated region
  $region18: #{_lambda_.12} parent=0 // pred_check
    _
  $region19: #{_lambda_.12} parent=0 // pred_check_branch
    %121 = sbr.rel (0) target = $region21
  $region20: #{_lambda_.12} parent=0 // pred_region
    _
  $region21: #{_lambda_.12} parent=0 // pred_fallthru
    _
  // Predicated region
  $region22: #{_lambda_.12} parent=0 // pred_check
    _
  $region23: #{_lambda_.12} parent=0 // pred_check_branch
    %123 = sbr.rel (0) target = $region25
  $region24: #{_lambda_.12} parent=0 // pred_region
    _
  $region25: #{_lambda_.12} parent=0 // pred_fallthru
    _

// kernel: _lambda_.14
$region0: #{_lambda_.14}
  #allocation0 [shape = 'u32[]', space=smem, size = 0x4, offset = 0x4, fixed_abs, tag = 'smem constant byte address 0x4 - core index']
  #allocation1 [shape = 'u32[144,128]{1,0:T(1,128)}', space=vmem, size = 0x12000, scoped, tag = 'internal scratch']
  #allocation2 [shape = 'f32[16,32]{1,0:T(8,128)}', space=vmem, size = 0x2000, scoped, tag = 'scratch operand']
  %s0 = inlined_call_operand.vmem [shape: f32[16,32], index: 0, kind: input, shape index: {}]
  %s1 = inlined_call_operand.vmem [shape: f32[32,32], index: 1, kind: input, shape index: {}]
  %s2 = inlined_call_operand.vmem [shape: f32[1,32], index: 2, kind: input, shape index: {}]
  %s3 = inlined_call_operand.vmem [shape: f32[16,32], index: 3, kind: input, shape index: {}]
  %s4 = inlined_call_operand.vmem [shape: f32[1,32], index: 4, kind: input, shape index: {}]
  %s5 = inlined_call_operand.vmem [shape: f32[1,32], index: 5, kind: input, shape index: {}]
  %s6 = inlined_call_operand.vmem [shape: f32[16,32], index: 6, kind: output, shape index: {}]
  %s7 = sld [smem:[#allocation0]]
  $region42: #{_lambda_.14} parent=0
    _
  %s9 = ssub.s32 1, %s7
  %s10 = scalar_select 0, %s9, %s7
  // Predicated region
  $region2: #{_lambda_.14} parent=0 // pred_check
    _
  $region3: #{_lambda_.14} parent=0 // pred_check_branch
    %12 = sbr.rel (0) target = $region5
  $region4: #{_lambda_.14} parent=0 // pred_region
    _
  $region5: #{_lambda_.14} parent=0 // pred_fallthru
    _
  // Predicated region
  $region6: #{_lambda_.14} parent=0 // pred_check
    _
  $region7: #{_lambda_.14} parent=0 // pred_check_branch
    %14 = sbr.rel (0) target = $region9
  $region8: #{_lambda_.14} parent=0 // pred_region
    _
  $region9: #{_lambda_.14} parent=0 // pred_fallthru
    _
  // Predicated region
  $region10: #{_lambda_.14} parent=0 // pred_check
    _
  $region11: #{_lambda_.14} parent=0 // pred_check_branch
    %16 = sbr.rel (0) target = $region13
  $region12: #{_lambda_.14} parent=0 // pred_region
    _
  $region13: #{_lambda_.14} parent=0 // pred_fallthru
    _
  // Predicated region
  $region14: #{_lambda_.14} parent=0 // pred_check
    _
  $region15: #{_lambda_.14} parent=0 // pred_check_branch
    %18 = sbr.rel (0) target = $region17
  $region16: #{_lambda_.14} parent=0 // pred_region
    _
  $region17: #{_lambda_.14} parent=0 // pred_fallthru
    _
  // Predicated region
  $region18: #{_lambda_.14} parent=0 // pred_check
    _
  $region19: #{_lambda_.14} parent=0 // pred_check_branch
    %20 = sbr.rel (0) target = $region21
  $region20: #{_lambda_.14} parent=0 // pred_region
    _
  $region21: #{_lambda_.14} parent=0 // pred_fallthru
    _
  // Predicated region
  $region22: #{_lambda_.14} parent=0 // pred_check
    _
  $region23: #{_lambda_.14} parent=0 // pred_check_branch
    %22 = sbr.rel (0) target = $region25
  $region24: #{_lambda_.14} parent=0 // pred_region
    _
  $region25: #{_lambda_.14} parent=0 // pred_fallthru
    _
  %p23 = scmp.eq.s32.totalorder 0, 0
  // Predicated region
  $region26: #{_lambda_.14} parent=0 // pred_check
    %p24 = pneg %p23
  $region27: #{_lambda_.14} parent=0 // pred_check_branch
    %26 = sbr.rel (%p24) target = $region29
  $region28: #{_lambda_.14} parent=0 // pred_region
    %vm27 = vcmask 261120
    %28 = vst.msk [vmem:[#allocation2] sm:$0xff] %vm27, 0.0
    %29 = vst.msk [vmem:[#allocation2 + $0x8] sm:$0xff] %vm27, 0.0
  $region29: #{_lambda_.14} parent=0 // pred_fallthru
    _
  %v30 = vld [vmem:[#allocation2] sm:$0xff]
  %v31 = vld [vmem:[#allocation2 + $0x8] sm:$0xff]
  %v32 = vld [vmem:[%s0] sm:$0xff]
  %v33 = vld [vmem:[%s0 + $0x8] sm:$0xff]
  %v34 = vld [vmem:[%s1] sm:$0xff]
  %v35 = vld [vmem:[%s1 + $0x8] sm:$0xff]
  %v36 = vld [vmem:[%s1 + $0x10] sm:$0xff]
  %v37 = vld [vmem:[%s1 + $0x18] sm:$0xff]
  %vm38 = vcmask 261120
  %v40 = vsel %vm38, %v32, 0
  %v43 = vsel %vm38, %v33, 0
  %45 = vmatprep.subr.mxu0 0.0
  %46 = vmatpush1.msra.mxu0 %v34
  %47 = vmatprep.subr.mxu0 0.0
  %48 = vmatpush1.msra.mxu0 %v35
  %49 = vmatprep.subr.mxu0 0.0
  %50 = vmatpush1.msra.mxu0 %v36
  %51 = vmatprep.subr.mxu0 0.0
  %52 = vmatpush1.msra.mxu0 %v37
  %53 = vmatprep.subr.mxu0 0.0
  %54 = vmatpush1.msra.mxu0 0.0
  %55 = vmatprep.subr.mxu0 0.0
  %56 = vmatpush1.msra.mxu0 0.0
  %57 = vmatprep.subr.mxu0 0.0
  %58 = vmatpush1.msra.mxu0 0.0
  %59 = vmatprep.subr.mxu0 0.0
  %60 = vmatpush1.msra.mxu0 0.0
  %61 = vmatprep.subr.mxu0 0.0
  %62 = vmatpush1.msra.mxu0 0.0
  %63 = vmatprep.subr.mxu0 0.0
  %64 = vmatpush1.msra.mxu0 0.0
  %65 = vmatprep.subr.mxu0 0.0
  %66 = vmatpush1.msra.mxu0 0.0
  %67 = vmatprep.subr.mxu0 0.0
  %68 = vmatpush1.msra.mxu0 0.0
  %69 = vmatprep.subr.mxu0 0.0
  %70 = vmatpush1.msra.mxu0 0.0
  %71 = vmatprep.subr.mxu0 0.0
  %72 = vmatpush1.msra.mxu0 0.0
  %73 = vmatprep.subr.mxu0 0.0
  %74 = vmatpush1.msra.mxu0 0.0
  %75 = vmatprep.subr.mxu0 0.0
  %76 = vmatpush1.msra.mxu0 0.0
  %77 = vmatprep.subr.mxu0 0.0
  %78 = vmatpush1.msra.mxu0 0.0
  %79 = vmatprep.subr.mxu0 0.0
  %80 = vmatpush1.msra.mxu0 0.0
  %81 = vmatprep.subr.mxu0 0.0
  %82 = vmatpush1.msra.mxu0 0.0
  %83 = vmatprep.subr.mxu0 0.0
  %84 = vmatpush1.msra.mxu0 0.0
  %85 = vmatprep.subr.mxu0 0.0
  %86 = vmatpush1.msra.mxu0 0.0
  %87 = vmatprep.subr.mxu0 0.0
  %88 = vmatpush1.msra.mxu0 0.0
  %89 = vmatprep.subr.mxu0 0.0
  %90 = vmatpush1.msra.mxu0 0.0
  %91 = vmatprep.subr.mxu0 0.0
  %92 = vmatpush1.msra.mxu0 0.0
  %93 = vmatprep.subr.mxu0 0.0
  %94 = vmatpush1.msra.mxu0 0.0
  %95 = vmatprep.subr.mxu0 0.0
  %96 = vmatpush1.msra.mxu0 0.0
  %97 = vmatprep.subr.mxu0 0.0
  %98 = vmatpush1.msra.mxu0 0.0
  %99 = vmatprep.subr.mxu0 0.0
  %100 = vmatpush1.msra.mxu0 0.0
  %101 = vmatprep.subr.mxu0 0.0
  %102 = vmatpush1.msra.mxu0 0.0
  %103 = vmatprep.subr.mxu0 0.0
  %104 = vmatpush1.msra.mxu0 0.0
  %105 = vmatprep.subr.mxu0 0.0
  %106 = vmatpush1.msra.mxu0 0.0
  %107 = vmatprep.subr.mxu0 0.0
  %108 = vmatpush1.msra.mxu0 0.0
  %109 = vmatprep.mubr.f32.mxu0 0.0
  %110 = vmatmul.mubr.f32.gmra.mrb[0].mxu0 %v40
  %v111 = vpop.f32.mrb[0].mxu0
  %v112 = vadd.f32 0.0, %v111
  %v113 = vpop.f32.mrb[0].mxu0
  %114 = vmatprep.mubr.f32.mxu0 0.0
  %115 = vmatmul.mubr.f32.gmra.mrb[0].mxu0 %v43
  %v116 = vpop.f32.mrb[0].mxu0
  %v117 = vadd.f32 0.0, %v116
  %v118 = vpop.f32.mrb[0].mxu0
  %119 = vdwg.mxu0
  %v120 = vadd.f32 %v30, %v112
  %v121 = vadd.f32 %v31, %v117
  %122 = vst.msk [vmem:[#allocation2] sm:$0xff] %vm38, %v120
  %123 = vst.msk [vmem:[#allocation2 + $0x8] sm:$0xff] %vm38, %v121
  // Predicated region
  $region30: #{_lambda_.14} parent=0 // pred_check
    %p124 = pneg %p23
  $region31: #{_lambda_.14} parent=0 // pred_check_branch
    %126 = sbr.rel (%p124) target = $region33
  $region32: #{_lambda_.14} parent=0 // pred_region
    %v127 = vld [vmem:[#allocation2] sm:$0xff]
    %v128 = vld [vmem:[#allocation2 + $0x8] sm:$0xff]
    %v129 = vld [vmem:[%s2] sm:$0x1]
    %v131 = vlaneseq
    %v132 = vshrl.u32 %v131, 7
    %v133 = vsub.s32 0, %v132
    %v134 = vrot.slane %v129, %v133
    %v136 = vadd.f32 %v127, %v134
    %v137 = vadd.f32 %v128, %v134
    %v138 = vld [vmem:[%s3] sm:$0xff]
    %v139 = vld [vmem:[%s3 + $0x8] sm:$0xff]
    %v140 = vadd.f32 %v136, %v138
    %v141 = vadd.f32 %v137, %v139
    %v142 = vsel %vm38, %v140, 0.0
    %143 = vadd.xlane.f32.xlu0 %v142
    %v144 = vpop.xlane.xlu0 %143
    %v145 = vsel %vm38, %v141, 0.0
    %146 = vadd.xlane.f32.xlu0 %v145
    %v147 = vpop.xlane.xlu0 %146
    %v148 = vrcp.pop 32.0
    %v149 = vmul.f32 %v144, %v148
    %v150 = vmul.f32 %v147, %v148
    %v151 = vsub.f32 %v140, %v149
    %v152 = vsub.f32 %v141, %v150
    %v153 = vmul.f32 %v151, %v151
    %v154 = vmul.f32 %v152, %v152
    %v155 = vsel %vm38, %v153, 0.0
    %156 = vadd.xlane.f32.xlu0 %v155
    %v157 = vpop.xlane.xlu0 %156
    %v158 = vsel %vm38, %v154, 0.0
    %159 = vadd.xlane.f32.xlu0 %v158
    %v160 = vpop.xlane.xlu0 %159
    %v161 = vmul.f32 %v157, %v148
    %v162 = vmul.f32 %v160, %v148
    %v163 = vadd.f32 %v161, 1e-05
    %v164 = vadd.f32 %v162, 1e-05
    %v165 = vrsqrt.pop %v163
    %v166 = vrsqrt.pop %v164
    %v167 = vmul.f32 %v151, %v165
    %v168 = vmul.f32 %v152, %v166
    %v169 = vld [vmem:[%s4] sm:$0x1]
    %v171 = vlaneseq
    %v172 = vshrl.u32 %v171, 7
    %v173 = vsub.s32 0, %v172
    %v174 = vrot.slane %v169, %v173
    %v176 = vmul.f32 %v167, %v174
    %v177 = vmul.f32 %v168, %v174
    %v178 = vld [vmem:[%s5] sm:$0x1]
    %v180 = vlaneseq
    %v181 = vshrl.u32 %v180, 7
    %v182 = vsub.s32 0, %v181
    %v183 = vrot.slane %v178, %v182
    %v185 = vadd.f32 %v176, %v183
    %v186 = vadd.f32 %v177, %v183
    %187 = vst.msk [vmem:[%s6] sm:$0xff] %vm38, %v185
    %188 = vst.msk [vmem:[%s6 + $0x8] sm:$0xff] %vm38, %v186
  $region33: #{_lambda_.14} parent=0 // pred_fallthru
    _
  // Predicated region
  $region34: #{_lambda_.14} parent=0 // pred_check
    _
  $region35: #{_lambda_.14} parent=0 // pred_check_branch
    %190 = sbr.rel (0) target = $region37
  $region36: #{_lambda_.14} parent=0 // pred_region
    _
  $region37: #{_lambda_.14} parent=0 // pred_fallthru
    _
  // Predicated region
  $region38: #{_lambda_.14} parent=0 // pred_check
    _
  $region39: #{_lambda_.14} parent=0 // pred_check_branch
    %192 = sbr.rel (0) target = $region41
  $region40: #{_lambda_.14} parent=0 // pred_region
    _
  $region41: #{_lambda_.14} parent=0 // pred_fallthru
    _

// kernel: _lambda_.13
$region0: #{_lambda_.13}
  #allocation0 [shape = 'u32[]', space=smem, size = 0x4, offset = 0x4, fixed_abs, tag = 'smem constant byte address 0x4 - core index']
  #allocation1 [shape = 'u32[144,128]{1,0:T(1,128)}', space=vmem, size = 0x12000, scoped, tag = 'internal scratch']
  #allocation2 [shape = 'f32[8,1]{1,0:T(8,128)}', space=vmem, size = 0x1000, scoped, tag = 'scratch operand']
  #allocation3 [shape = 'f32[8,1]{1,0:T(8,128)}', space=vmem, size = 0x1000, scoped, tag = 'scratch operand']
  #allocation4 [shape = 'f32[8,16]{1,0:T(8,128)}', space=vmem, size = 0x1000, scoped, tag = 'scratch operand']
  %s0 = inlined_call_operand.vmem [shape: f32[4,8,16], index: 0, kind: input, shape index: {}]
  %s1 = inlined_call_operand.vmem [shape: f32[4,8,16], index: 1, kind: input, shape index: {}]
  %s2 = inlined_call_operand.vmem [shape: f32[4,8,16], index: 2, kind: input, shape index: {}]
  %s3 = inlined_call_operand.vmem [shape: f32[4,8,16], index: 3, kind: output, shape index: {}]
  %s4 = sld [smem:[#allocation0]]
  $region57: #{_lambda_.13} parent=0
    _
  %s6 = ssub.s32 1, %s4
  %s7 = scalar_select 0, %s6, %s4
  loop: start=0, step=1, limit=6
  $region2: #{_lambda_.13} parent=0 // loop_pre_header
    _
  $region3: #{_lambda_.13} parent=0 // loop_header
    %s9 = sphi 0, %s13
    %p10 = scmp.ge.s32.totalorder %s9, 6
    %s16 = sphi 0, %s35
    %s17 = sphi 0, %s31
    %s18 = sphi 0, %s27
    %s19 = sphi 0, %s16
    %s20 = sphi 0, %s17
    %s21 = sphi 0, %s18
    %s22 = sphi 0, %s19
    %s23 = sphi 0, %s20
    %s24 = sphi 0, %s21
    %s40 = sphi 0, %s42
    %s43 = sphi 0, %s40
    %s44 = sphi 0, %s43
    %s60 = sphi 0, %s44
    %s68 = sphi 0, %s70
    %s71 = sphi 0, %s68
    %s72 = sphi 0, %s71
    %s88 = sphi 0, %s72
    %s96 = sphi 0, %s98
    %s99 = sphi 0, %s96
    %s100 = sphi 0, %s99
    %s116 = sphi 0, %s100
    %s124 = sphi 0, %s126
    %s127 = sphi 0, %s124
    %s128 = sphi 0, %s127
    %s144 = sphi 0, %s128
  $region4: #{_lambda_.13} parent=0 // loop_header_branch
    %12 = sbr.rel (%p10) target = $region8
  $region5: #{_lambda_.13} parent=0 // loop_body
    %s14 = ssub.s32 %s9, 1
    %s15 = ssub.s32 %s9, 2
    %s25 = sadd.s32 1, %s18
    %p26 = scmp.ge.s32.totalorder %s25, 1
    %s27 = scalar_select %p26, 0, %s25
    %s28 = sadd.s32 1, %s17
    %s29 = scalar_select %p26, %s28, %s17
    %p30 = scmp.ge.s32.totalorder %s29, 1
    %s31 = scalar_select %p30, 0, %s29
    %s32 = sadd.s32 1, %s16
    %s33 = scalar_select %p30, %s32, %s16
    %p34 = scmp.ge.s32.totalorder %s33, 4
    %s35 = scalar_select %p34, 0, %s33
    %s36 = ssub.s32 %s16, %s35
    %s37 = ssub.s32 %s17, %s31
    %s38 = sor.u32 %s36, %s37
    %p39 = scmp.eq.s32.totalorder %s38, 0
    %s41 = sadd.s32 %s40, 1
    %s42 = scalar_select %p39, %s40, %s41
    %p45 = pneg %p39
    %p46 = scmp.eq.s32.totalorder %s9, 3
    %p47 = por %p45, %p46
    %p48 = scmp.ne.s32.totalorder %s40, %s43
    %p49 = scmp.eq.s32.totalorder %s9, 0
    %p50 = por %p48, %p49
    %p51 = scmp.ne.s32.totalorder %s40, %s43
    %p52 = scmp.eq.s32.totalorder %s14, 3
    %p53 = por %p51, %p52
    %p54 = scmp.ne.s32.totalorder %s43, %s44
    %p55 = scmp.eq.s32.totalorder %s14, 0
    %p56 = por %p54, %p55
    %p57 = scmp.ne.s32.totalorder %s43, %s44
    %p58 = scmp.eq.s32.totalorder %s15, 3
    %p59 = por %p57, %p58
    %p61 = scmp.ne.s32.totalorder %s44, %s60
    %p62 = scmp.eq.s32.totalorder %s15, 0
    %p63 = por %p61, %p62
    %s64 = ssub.s32 %s16, %s35
    %s65 = ssub.s32 %s18, %s27
    %s66 = sor.u32 %s64, %s65
    %p67 = scmp.eq.s32.totalorder %s66, 0
    %s69 = sadd.s32 %s68, 1
    %s70 = scalar_select %p67, %s68, %s69
    %p73 = pneg %p67
    %p74 = scmp.eq.s32.totalorder %s9, 3
    %p75 = por %p73, %p74
    %p76 = scmp.ne.s32.totalorder %s68, %s71
    %p77 = scmp.eq.s32.totalorder %s9, 0
    %p78 = por %p76, %p77
    %p79 = scmp.ne.s32.totalorder %s68, %s71
    %p80 = scmp.eq.s32.totalorder %s14, 3
    %p81 = por %p79, %p80
    %p82 = scmp.ne.s32.totalorder %s71, %s72
    %p83 = scmp.eq.s32.totalorder %s14, 0
    %p84 = por %p82, %p83
    %p85 = scmp.ne.s32.totalorder %s71, %s72
    %p86 = scmp.eq.s32.totalorder %s15, 3
    %p87 = por %p85, %p86
    %p89 = scmp.ne.s32.totalorder %s72, %s88
    %p90 = scmp.eq.s32.totalorder %s15, 0
    %p91 = por %p89, %p90
    %s92 = ssub.s32 %s16, %s35
    %s93 = ssub.s32 %s18, %s27
    %s94 = sor.u32 %s92, %s93
    %p95 = scmp.eq.s32.totalorder %s94, 0
    %s97 = sadd.s32 %s96, 1
    %s98 = scalar_select %p95, %s96, %s97
    %p101 = pneg %p95
    %p102 = scmp.eq.s32.totalorder %s9, 3
    %p103 = por %p101, %p102
    %p104 = scmp.ne.s32.totalorder %s96, %s99
    %p105 = scmp.eq.s32.totalorder %s9, 0
    %p106 = por %p104, %p105
    %p107 = scmp.ne.s32.totalorder %s96, %s99
    %p108 = scmp.eq.s32.totalorder %s14, 3
    %p109 = por %p107, %p108
    %p110 = scmp.ne.s32.totalorder %s99, %s100
    %p111 = scmp.eq.s32.totalorder %s14, 0
    %p112 = por %p110, %p111
    %p113 = scmp.ne.s32.totalorder %s99, %s100
    %p114 = scmp.eq.s32.totalorder %s15, 3
    %p115 = por %p113, %p114
    %p117 = scmp.ne.s32.totalorder %s100, %s116
    %p118 = scmp.eq.s32.totalorder %s15, 0
    %p119 = por %p117, %p118
    %s120 = ssub.s32 %s16, %s35
    %s121 = ssub.s32 %s17, %s31
    %s122 = sor.u32 %s120, %s121
    %p123 = scmp.eq.s32.totalorder %s122, 0
    %s125 = sadd.s32 %s124, 1
    %s126 = scalar_select %p123, %s124, %s125
    %p129 = pneg %p123
    %p130 = scmp.eq.s32.totalorder %s9, 3
    %p131 = por %p129, %p130
    %p132 = scmp.ne.s32.totalorder %s124, %s127
    %p133 = scmp.eq.s32.totalorder %s9, 0
    %p134 = por %p132, %p133
    %p135 = scmp.ne.s32.totalorder %s124, %s127
    %p136 = scmp.eq.s32.totalorder %s14, 3
    %p137 = por %p135, %p136
    %p138 = scmp.ne.s32.totalorder %s127, %s128
    %p139 = scmp.eq.s32.totalorder %s14, 0
    %p140 = por %p138, %p139
    %p141 = scmp.ne.s32.totalorder %s127, %s128
    %p142 = scmp.eq.s32.totalorder %s15, 3
    %p143 = por %p141, %p142
    %p145 = scmp.ne.s32.totalorder %s128, %s144
    %p146 = scmp.eq.s32.totalorder %s15, 0
    %p147 = por %p145, %p146
    %p148 = scmp.le.s32.totalorder 1, %s9
    %p149 = scmp.lt.s32.totalorder %s9, 5
    %p150 = pnand %p148, %p149
    %p151 = pneg %p150
    // Predicated region
    $region9: #{_lambda_.13} parent=5 // pred_check
      _
    $region10: #{_lambda_.13} parent=5 // pred_check_branch
      %153 = sbr.rel (%p150) target = $region12
    $region11: #{_lambda_.13} parent=5 // pred_region
      %s154 = ssub.s32 %s9, 1
    $region12: #{_lambda_.13} parent=5 // pred_fallthru
      _
    %p155 = scmp.lt.s32.totalorder %s9, 4
    // Predicated region
    $region13: #{_lambda_.13} parent=5 // pred_check
      %p156 = pneg %p155
    $region14: #{_lambda_.13} parent=5 // pred_check_branch
      %158 = sbr.rel (%p156) target = $region16
    $region15: #{_lambda_.13} parent=5 // pred_region
      // Predicated region
      $region17: #{_lambda_.13} parent=15 // pred_check
        %p159 = pneg %p50
      $region18: #{_lambda_.13} parent=15 // pred_check_branch
        %161 = sbr.rel (%p159) target = $region20
      $region19: #{_lambda_.13} parent=15 // pred_region
        %p162 = scmp.lt.s32.totalorder %s16, 3
        %s163 = scalar_select %p162, %s16, 3
        %p164 = scmp.lt.s32.totalorder %s17, 0
        %s165 = scalar_select %p164, %s17, 0
        %s166 = sadd.s32 %s165, %s163
        %s167 = smul.addr %s166, 8
        %s168 = scalar_lea.vmem %s0, %s167
      $region20: #{_lambda_.13} parent=15 // pred_fallthru
        _
      // Predicated region
      $region21: #{_lambda_.13} parent=15 // pred_check
        %p169 = pneg %p78
      $region22: #{_lambda_.13} parent=15 // pred_check_branch
        %171 = sbr.rel (%p169) target = $region24
      $region23: #{_lambda_.13} parent=15 // pred_region
        %p172 = scmp.lt.s32.totalorder %s16, 3
        %s173 = scalar_select %p172, %s16, 3
        %p174 = scmp.lt.s32.totalorder %s18, 0
        %s175 = scalar_select %p174, %s18, 0
        %s176 = sadd.s32 %s175, %s173
        %s177 = smul.addr %s176, 8
        %s178 = scalar_lea.vmem %s1, %s177
      $region24: #{_lambda_.13} parent=15 // pred_fallthru
        _
      // Predicated region
      $region25: #{_lambda_.13} parent=15 // pred_check
        %p179 = pneg %p106
      $region26: #{_lambda_.13} parent=15 // pred_check_branch
        %181 = sbr.rel (%p179) target = $region28
      $region27: #{_lambda_.13} parent=15 // pred_region
        %p182 = scmp.lt.s32.totalorder %s16, 3
        %s183 = scalar_select %p182, %s16, 3
        %p184 = scmp.lt.s32.totalorder %s18, 0
        %s185 = scalar_select %p184, %s18, 0
        %s186 = sadd.s32 %s185, %s183
        %s187 = smul.addr %s186, 8
        %s188 = scalar_lea.vmem %s2, %s187
      $region28: #{_lambda_.13} parent=15 // pred_fallthru
        _
    $region16: #{_lambda_.13} parent=5 // pred_fallthru
      _
    %p189 = scmp.le.s32.totalorder 1, %s9
    %p190 = scmp.lt.s32.totalorder %s9, 5
    %p191 = pnand %p189, %p190
    %p192 = pneg %p191
    // Predicated region
    $region29: #{_lambda_.13} parent=5 // pred_check
      _
    $region30: #{_lambda_.13} parent=5 // pred_check_branch
      %194 = sbr.rel (%p191) target = $region32
    $region31: #{_lambda_.13} parent=5 // pred_region
      %s195 = ssub.s32 %s9, 1
      %p196 = scmp.lt.s32.totalorder %s19, 3
      %s197 = scalar_select %p196, %s19, 3
      %p198 = scmp.lt.s32.totalorder %s20, 0
      %s199 = scalar_select %p198, %s20, 0
      %s200 = sadd.s32 %s199, %s197
      %s201 = smul.addr %s200, 8
      %s202 = scalar_lea.vmem %s0, %s201
      %p203 = pneg %p56
      %p204 = pneg %p53
      %p205 = scmp.lt.s32.totalorder %s19, 3
      %s206 = scalar_select %p205, %s19, 3
      %p207 = scmp.lt.s32.totalorder %s21, 0
      %s208 = scalar_select %p207, %s21, 0
      %s209 = sadd.s32 %s208, %s206
      %s210 = smul.addr %s209, 8
      %s211 = scalar_lea.vmem %s1, %s210
      %p212 = pneg %p84
      %p213 = pneg %p81
      %p214 = scmp.lt.s32.totalorder %s19, 3
      %s215 = scalar_select %p214, %s19, 3
      %p216 = scmp.lt.s32.totalorder %s21, 0
      %s217 = scalar_select %p216, %s21, 0
      %s218 = sadd.s32 %s217, %s215
      %s219 = smul.addr %s218, 8
      %s220 = scalar_lea.vmem %s2, %s219
      %p221 = pneg %p112
      %p222 = pneg %p109
      %p223 = pneg %p140
      %p224 = pneg %p137
      %p225 = scmp.lt.s32.totalorder %s19, 3
      %s226 = scalar_select %p225, %s19, 3
      %p227 = scmp.lt.s32.totalorder %s20, 0
      %s228 = scalar_select %p227, %s20, 0
      %s229 = sadd.s32 %s228, %s226
      %s230 = smul.addr %s229, 8
      %s231 = scalar_lea.vmem %s3, %s230
      %p232 = scmp.lt.s32.totalorder %s19, 3
      %s233 = scalar_select %p232, %s19, 3
      %p234 = scmp.lt.s32.totalorder %s20, 0
      %s235 = scalar_select %p234, %s20, 0
      %s236 = sadd.s32 %s235, %s233
      %s237 = smul.addr %s236, 8
      %s238 = scalar_lea.vmem %s0, %s237
      %p239 = scmp.lt.s32.totalorder %s19, 3
      %s240 = scalar_select %p239, %s19, 3
      %p241 = scmp.lt.s32.totalorder %s21, 0
      %s242 = scalar_select %p241, %s21, 0
      %s243 = sadd.s32 %s242, %s240
      %s244 = smul.addr %s243, 8
      %s245 = scalar_lea.vmem %s1, %s244
      %p246 = scmp.lt.s32.totalorder %s19, 3
      %s247 = scalar_select %p246, %s19, 3
      %p248 = scmp.lt.s32.totalorder %s21, 0
      %s249 = scalar_select %p248, %s21, 0
      %s250 = sadd.s32 %s249, %s247
      %s251 = smul.addr %s250, 8
      %s252 = scalar_lea.vmem %s2, %s251
      %p253 = scmp.lt.s32.totalorder %s19, 3
      %s254 = scalar_select %p253, %s19, 3
      %p255 = scmp.lt.s32.totalorder %s20, 0
      %s256 = scalar_select %p255, %s20, 0
      %s257 = sadd.s32 %s256, %s254
      %s258 = smul.addr %s257, 8
      %s259 = scalar_lea.vmem %s3, %s258
      %p260 = scmp.eq.s32.totalorder %s21, 0
      // Predicated region
      $region33: #{_lambda_.13} parent=31 // pred_check
        %p261 = pneg %p260
      $region34: #{_lambda_.13} parent=31 // pred_check_branch
        %263 = sbr.rel (%p261) target = $region36
      $region35: #{_lambda_.13} parent=31 // pred_region
        %vm264 = vcmask 7168
        %265 = vst.msk [vmem:[#allocation2] sm:$0xff] %vm264, -inf
        %266 = vst.msk [vmem:[#allocation3] sm:$0xff] %vm264, 0.0
        %vm267 = vcmask 130048
        %268 = vst.msk [vmem:[#allocation4] sm:$0xff] %vm267, 0.0
      $region36: #{_lambda_.13} parent=31 // pred_fallthru
        _
      %s269 = smul.u32 %s21, 8
      %s270 = sadd.s32 %s20, 1
      %s271 = smul.u32 %s270, 8
      %p272 = scmp.lt.s32.totalorder %s269, %s271
      // Predicated region
      $region37: #{_lambda_.13} parent=31 // pred_check
        %p273 = pneg %p272
      $region38: #{_lambda_.13} parent=31 // pred_check_branch
        %275 = sbr.rel (%p273) target = $region40
      $region39: #{_lambda_.13} parent=31 // pred_region
        %v276 = vld [vmem:[%s238] sm:$0xff]
        %v277 = vmul.f32 %v276, 0.25
        %v278 = vld [vmem:[%s245] sm:$0xff]
        %v279 = vld [vmem:[%s252] sm:$0xff]
        %vm280 = vcmask 130048
        %v282 = vsel %vm280, %v277, 0
        %v285 = vsel %vm280, %v278, 0
        %287 = vmatprep.subr.mxu0 0.0
        %288 = vmatpush1.xpose.msra.mxu0 %v285
        %289 = vmatprep.subr.mxu0 0.0
        %290 = vmatpush1.xpose.msra.mxu0 0.0
        %291 = vmatprep.subr.mxu0 0.0
        %292 = vmatpush1.xpose.msra.mxu0 0.0
        %293 = vmatprep.subr.mxu0 0.0
        %294 = vmatpush1.xpose.msra.mxu0 0.0
        %295 = vmatprep.subr.mxu0 0.0
        %296 = vmatpush1.xpose.msra.mxu0 0.0
        %297 = vmatprep.subr.mxu0 0.0
        %298 = vmatpush1.xpose.msra.mxu0 0.0
        %299 = vmatprep.subr.mxu0 0.0
        %300 = vmatpush1.xpose.msra.mxu0 0.0
        %301 = vmatprep.subr.mxu0 0.0
        %302 = vmatpush1.xpose.msra.mxu0 0.0
        %303 = vmatprep.subr.mxu0 0.0
        %304 = vmatpush1.xpose.msra.mxu0 0.0
        %305 = vmatprep.subr.mxu0 0.0
        %306 = vmatpush1.xpose.msra.mxu0 0.0
        %307 = vmatprep.subr.mxu0 0.0
        %308 = vmatpush1.xpose.msra.mxu0 0.0
        %309 = vmatprep.subr.mxu0 0.0
        %310 = vmatpush1.xpose.msra.mxu0 0.0
        %311 = vmatprep.subr.mxu0 0.0
        %312 = vmatpush1.xpose.msra.mxu0 0.0
        %313 = vmatprep.subr.mxu0 0.0
        %314 = vmatpush1.xpose.msra.mxu0 0.0
        %315 = vmatprep.subr.mxu0 0.0
        %316 = vmatpush1.xpose.msra.mxu0 0.0
        %317 = vmatprep.subr.mxu0 0.0
        %318 = vmatpush1.xpose.msra.mxu0 0.0
        %319 = vmatprep.subr.mxu0 0.0
        %320 = vmatpush1.xpose.msra.mxu0 0.0
        %321 = vmatprep.subr.mxu0 0.0
        %322 = vmatpush1.xpose.msra.mxu0 0.0
        %323 = vmatprep.subr.mxu0 0.0
        %324 = vmatpush1.xpose.msra.mxu0 0.0
        %325 = vmatprep.subr.mxu0 0.0
        %326 = vmatpush1.xpose.msra.mxu0 0.0
        %327 = vmatprep.subr.mxu0 0.0
        %328 = vmatpush1.xpose.msra.mxu0 0.0
        %329 = vmatprep.subr.mxu0 0.0
        %330 = vmatpush1.xpose.msra.mxu0 0.0
        %331 = vmatprep.subr.mxu0 0.0
        %332 = vmatpush1.xpose.msra.mxu0 0.0
        %333 = vmatprep.subr.mxu0 0.0
        %334 = vmatpush1.xpose.msra.mxu0 0.0
        %335 = vmatprep.subr.mxu0 0.0
        %336 = vmatpush1.xpose.msra.mxu0 0.0
        %337 = vmatprep.subr.mxu0 0.0
        %338 = vmatpush1.xpose.msra.mxu0 0.0
        %339 = vmatprep.subr.mxu0 0.0
        %340 = vmatpush1.xpose.msra.mxu0 0.0
        %341 = vmatprep.subr.mxu0 0.0
        %342 = vmatpush1.xpose.msra.mxu0 0.0
        %343 = vmatprep.subr.mxu0 0.0
        %344 = vmatpush1.xpose.msra.mxu0 0.0
        %345 = vmatprep.subr.mxu0 0.0
        %346 = vmatpush1.xpose.msra.mxu0 0.0
        %347 = vmatprep.subr.mxu0 0.0
        %348 = vmatpush1.xpose.msra.mxu0 0.0
        %349 = vmatprep.subr.mxu0 0.0
        %350 = vmatpush1.xpose.msra.mxu0 0.0
        %351 = vmatprep.mubr.f32.mxu0 0.0
        %352 = vmatmul.mubr.f32.gmra.mrb[0].mxu0 %v282
        %v353 = vpop.f32.mrb[0].mxu0
        %v354 = vadd.f32 0.0, %v353
        %v355 = vpop.f32.mrb[0].mxu0
        %356 = vdwg.mxu0
        %s357 = smul.u32 %s20, 8
        %v358 = vlaneseq
        %v359 = vshrl.u32 %v358, 7
        %v360 = vstv %s357
        %v361 = vadd.s32 %v360, %v359
        %v362 = vlaneseq
        %v363 = vand.u32 %v362, 127
        %v364 = vstv %s269
        %v365 = vadd.s32 %v364, %v363
        %vm366 = vcmp.le.s32.totalorder %v365, %v361
        %v367 = vsel %vm366, %v354, -1e+30
        %v368 = vld [vmem:[#allocation2] sm:$0xff]
        %vm369 = vcmask 64512
        %v370 = vsel %vm369, %v367, -inf
        %371 = vmax.xlane.f32.xlu0 %v370
        %v372 = vpop.xlane.xlu0 %371
        %v373 = vmax.f32 %v368, %v372
        %v374 = vsub.f32 %v368, %v373
        %v375 = vmul.f32 %v374, 1.442695
        %v376 = vpow.pop %v375
        %378 = vset.pattern.permute.xlu0 0
        %379 = vperm.xlu0 %378, %v373
        %v380 = vpop.permute.xlu0 %379
        %v382 = vsub.f32 %v367, %v380
        %v383 = vmul.f32 %v382, 1.442695
        %v384 = vpow.pop %v383
        %v385 = vld [vmem:[#allocation3] sm:$0xff]
        %v386 = vmul.f32 %v376, %v385
        %v387 = vsel %vm369, %v384, 0.0
        %388 = vadd.xlane.f32.xlu0 %v387
        %v389 = vpop.xlane.xlu0 %388
        %v390 = vadd.f32 %v386, %v389
        %vm391 = vcmask 7168
        %392 = vst.msk [vmem:[#allocation3] sm:$0xff] %vm391, %v390
        %v393 = vld [vmem:[#allocation4] sm:$0xff]
        %395 = vset.pattern.permute.xlu0 0
        %396 = vperm.xlu0 %395, %v376
        %v397 = vpop.permute.xlu0 %396
        %v399 = vmul.f32 %v397, %v393
        %v401 = vsel %vm369, %v384, 0
        %403 = vmatprep.subr.mxu0 0.0
        %404 = vmatpush1.msra.mxu0 %v279
        %405 = vmatprep.subr.mxu0 0.0
        %406 = vmatpush1.msra.mxu0 0.0
        %407 = vmatprep.subr.mxu0 0.0
        %408 = vmatpush1.msra.mxu0 0.0
        %409 = vmatprep.subr.mxu0 0.0
        %410 = vmatpush1.msra.mxu0 0.0
        %411 = vmatprep.subr.mxu0 0.0
        %412 = vmatpush1.msra.mxu0 0.0
        %413 = vmatprep.subr.mxu0 0.0
        %414 = vmatpush1.msra.mxu0 0.0
        %415 = vmatprep.subr.mxu0 0.0
        %416 = vmatpush1.msra.mxu0 0.0
        %417 = vmatprep.subr.mxu0 0.0
        %418 = vmatpush1.msra.mxu0 0.0
        %419 = vmatprep.subr.mxu0 0.0
        %420 = vmatpush1.msra.mxu0 0.0
        %421 = vmatprep.subr.mxu0 0.0
        %422 = vmatpush1.msra.mxu0 0.0
        %423 = vmatprep.subr.mxu0 0.0
        %424 = vmatpush1.msra.mxu0 0.0
        %425 = vmatprep.subr.mxu0 0.0
        %426 = vmatpush1.msra.mxu0 0.0
        %427 = vmatprep.subr.mxu0 0.0
        %428 = vmatpush1.msra.mxu0 0.0
        %429 = vmatprep.subr.mxu0 0.0
        %430 = vmatpush1.msra.mxu0 0.0
        %431 = vmatprep.subr.mxu0 0.0
        %432 = vmatpush1.msra.mxu0 0.0
        %433 = vmatprep.subr.mxu0 0.0
        %434 = vmatpush1.msra.mxu0 0.0
        %435 = vmatprep.subr.mxu0 0.0
        %436 = vmatpush1.msra.mxu0 0.0
        %437 = vmatprep.subr.mxu0 0.0
        %438 = vmatpush1.msra.mxu0 0.0
        %439 = vmatprep.subr.mxu0 0.0
        %440 = vmatpush1.msra.mxu0 0.0
        %441 = vmatprep.subr.mxu0 0.0
        %442 = vmatpush1.msra.mxu0 0.0
        %443 = vmatprep.subr.mxu0 0.0
        %444 = vmatpush1.msra.mxu0 0.0
        %445 = vmatprep.subr.mxu0 0.0
        %446 = vmatpush1.msra.mxu0 0.0
        %447 = vmatprep.subr.mxu0 0.0
        %448 = vmatpush1.msra.mxu0 0.0
        %449 = vmatprep.subr.mxu0 0.0
        %450 = vmatpush1.msra.mxu0 0.0
        %451 = vmatprep.subr.mxu0 0.0
        %452 = vmatpush1.msra.mxu0 0.0
        %453 = vmatprep.subr.mxu0 0.0
        %454 = vmatpush1.msra.mxu0 0.0
        %455 = vmatprep.subr.mxu0 0.0
        %456 = vmatpush1.msra.mxu0 0.0
        %457 = vmatprep.subr.mxu0 0.0
        %458 = vmatpush1.msra.mxu0 0.0
        %459 = vmatprep.subr.mxu0 0.0
        %460 = vmatpush1.msra.mxu0 0.0
        %461 = vmatprep.subr.mxu0 0.0
        %462 = vmatpush1.msra.mxu0 0.0
        %463 = vmatprep.subr.mxu0 0.0
        %464 = vmatpush1.msra.mxu0 0.0
        %465 = vmatprep.subr.mxu0 0.0
        %466 = vmatpush1.msra.mxu0 0.0
        %467 = vmatprep.mubr.f32.mxu0 0.0
        %468 = vmatmul.mubr.f32.gmra.mrb[0].mxu0 %v401
        %v469 = vpop.f32.mrb[0].mxu0
        %v470 = vadd.f32 0.0, %v469
        %v471 = vpop.f32.mrb[0].mxu0
        %472 = vdwg.mxu0
        %v473 = vadd.f32 %v399, %v470
        %474 = vst.msk [vmem:[#allocation4] sm:$0xff] %vm280, %v473
        %475 = vst.msk [vmem:[#allocation2] sm:$0xff] %vm391, %v373
      $region40: #{_lambda_.13} parent=31 // pred_fallthru
        _
      // Predicated region
      $region41: #{_lambda_.13} parent=31 // pred_check
        %p476 = pneg %p260
      $region42: #{_lambda_.13} parent=31 // pred_check_branch
        %478 = sbr.rel (%p476) target = $region44
      $region43: #{_lambda_.13} parent=31 // pred_region
        %v479 = vld [vmem:[#allocation3] sm:$0xff]
        %v480 = vrcp.pop %v479
        %v481 = vld [vmem:[#allocation4] sm:$0xff]
        %483 = vset.pattern.permute.xlu0 0
        %484 = vperm.xlu0 %483, %v480
        %v485 = vpop.permute.xlu0 %484
        %v487 = vmul.f32 %v481, %v485
        %vm488 = vcmask 130048
        %489 = vst.msk [vmem:[%s259] sm:$0xff] %vm488, %v487
      $region44: #{_lambda_.13} parent=31 // pred_fallthru
        _
      %p490 = scmp.lt.s32.totalorder %s19, 3
      %s491 = scalar_select %p490, %s19, 3
      %p492 = scmp.lt.s32.totalorder %s20, 0
      %s493 = scalar_select %p492, %s20, 0
      %s494 = sadd.s32 %s493, %s491
      %s495 = smul.addr %s494, 8
      %s496 = scalar_lea.vmem %s3, %s495
      // Predicated region
      $region45: #{_lambda_.13} parent=31 // pred_check
        %p497 = pneg %p137
      $region46: #{_lambda_.13} parent=31 // pred_check_branch
        %499 = sbr.rel (%p497) target = $region48
      $region47: #{_lambda_.13} parent=31 // pred_region
        _
      $region48: #{_lambda_.13} parent=31 // pred_fallthru
        _
    $region32: #{_lambda_.13} parent=5 // pred_fallthru
      _
    %p500 = scmp.le.s32.totalorder 2, %s9
    // Predicated region
    $region49: #{_lambda_.13} parent=5 // pred_check
      %p501 = pneg %p500
    $region50: #{_lambda_.13} parent=5 // pred_check_branch
      %503 = sbr.rel (%p501) target = $region52
    $region51: #{_lambda_.13} parent=5 // pred_region
      %s504 = ssub.s32 %s9, 2
      // Predicated region
      $region53: #{_lambda_.13} parent=51 // pred_check
        %p505 = pneg %p143
      $region54: #{_lambda_.13} parent=51 // pred_check_branch
        %507 = sbr.rel (%p505) target = $region56
      $region55: #{_lambda_.13} parent=51 // pred_region
        %p508 = scmp.lt.s32.totalorder %s22, 3
        %s509 = scalar_select %p508, %s22, 3
        %p510 = scmp.lt.s32.totalorder %s23, 0
        %s511 = scalar_select %p510, %s23, 0
        %s512 = sadd.s32 %s511, %s509
        %s513 = smul.addr %s512, 8
        %s514 = scalar_lea.vmem %s3, %s513
      $region56: #{_lambda_.13} parent=51 // pred_fallthru
        _
    $region52: #{_lambda_.13} parent=5 // pred_fallthru
      _
  $region6: #{_lambda_.13} parent=0 // loop_footer
    %s13 = sadd.s32 1, %s9
  $region7: #{_lambda_.13} parent=0 // loop_footer_branch
    %8 = sbr.rel target = $region3
  $region8: #{_lambda_.13} parent=0 // loop_exit
    _

// kernel: _lambda_.22
$region0: #{_lambda_.22}
  #allocation0 [shape = 'u32[]', space=smem, size = 0x4, offset = 0x4, fixed_abs, tag = 'smem constant byte address 0x4 - core index']
  #allocation1 [shape = 'u32[144,128]{1,0:T(1,128)}', space=vmem, size = 0x12000, scoped, tag = 'internal scratch']
  %s0 = inlined_call_operand.vmem [shape: f32[16,32], index: 0, kind: input, shape index: {}]
  %s1 = inlined_call_operand.vmem [shape: f32[1,32], index: 1, kind: input, shape index: {}]
  %s2 = inlined_call_operand.vmem [shape: f32[1,32], index: 2, kind: input, shape index: {}]
  %s3 = inlined_call_operand.vmem [shape: f32[16,32], index: 3, kind: output, shape index: {}]
  %s4 = sld [smem:[#allocation0]]
  $region22: #{_lambda_.22} parent=0
    _
  %s6 = ssub.s32 1, %s4
  %s7 = scalar_select 0, %s6, %s4
  // Predicated region
  $region2: #{_lambda_.22} parent=0 // pred_check
    _
  $region3: #{_lambda_.22} parent=0 // pred_check_branch
    %9 = sbr.rel (0) target = $region5
  $region4: #{_lambda_.22} parent=0 // pred_region
    _
  $region5: #{_lambda_.22} parent=0 // pred_fallthru
    _
  // Predicated region
  $region6: #{_lambda_.22} parent=0 // pred_check
    _
  $region7: #{_lambda_.22} parent=0 // pred_check_branch
    %11 = sbr.rel (0) target = $region9
  $region8: #{_lambda_.22} parent=0 // pred_region
    _
  $region9: #{_lambda_.22} parent=0 // pred_fallthru
    _
  // Predicated region
  $region10: #{_lambda_.22} parent=0 // pred_check
    _
  $region11: #{_lambda_.22} parent=0 // pred_check_branch
    %13 = sbr.rel (0) target = $region13
  $region12: #{_lambda_.22} parent=0 // pred_region
    _
  $region13: #{_lambda_.22} parent=0 // pred_fallthru
    _
  %v14 = vld [vmem:[%s0] sm:$0xff]
  %v15 = vld [vmem:[%s0 + $0x8] sm:$0xff]
  %vm16 = vcmask 261120
  %v17 = vsel %vm16, %v14, 0.0
  %18 = vadd.xlane.f32.xlu0 %v17
  %v19 = vpop.xlane.xlu0 %18
  %v20 = vsel %vm16, %v15, 0.0
  %21 = vadd.xlane.f32.xlu0 %v20
  %v22 = vpop.xlane.xlu0 %21
  %v23 = vrcp.pop 32.0
  %v24 = vmul.f32 %v19, %v23
  %v25 = vmul.f32 %v22, %v23
  %v26 = vsub.f32 %v14, %v24
  %v27 = vsub.f32 %v15, %v25
  %v28 = vmul.f32 %v26, %v26
  %v29 = vmul.f32 %v27, %v27
  %v30 = vsel %vm16, %v28, 0.0
  %31 = vadd.xlane.f32.xlu0 %v30
  %v32 = vpop.xlane.xlu0 %31
  %v33 = vsel %vm16, %v29, 0.0
  %34 = vadd.xlane.f32.xlu0 %v33
  %v35 = vpop.xlane.xlu0 %34
  %v36 = vmul.f32 %v32, %v23
  %v37 = vmul.f32 %v35, %v23
  %v38 = vadd.f32 %v36, 1e-05
  %v39 = vadd.f32 %v37, 1e-05
  %v40 = vrsqrt.pop %v38
  %v41 = vrsqrt.pop %v39
  %v42 = vmul.f32 %v26, %v40
  %v43 = vmul.f32 %v27, %v41
  %v44 = vld [vmem:[%s1] sm:$0x1]
  %v46 = vlaneseq
  %v47 = vshrl.u32 %v46, 7
  %v48 = vsub.s32 0, %v47
  %v49 = vrot.slane %v44, %v48
  %v51 = vmul.f32 %v42, %v49
  %v52 = vmul.f32 %v43, %v49
  %v53 = vld [vmem:[%s2] sm:$0x1]
  %v55 = vlaneseq
  %v56 = vshrl.u32 %v55, 7
  %v57 = vsub.s32 0, %v56
  %v58 = vrot.slane %v53, %v57
  %v60 = vadd.f32 %v51, %v58
  %v61 = vadd.f32 %v52, %v58
  %62 = vst.msk [vmem:[%s3] sm:$0xff] %vm16, %v60
  %63 = vst.msk [vmem:[%s3 + $0x8] sm:$0xff] %vm16, %v61
  // Predicated region
  $region14: #{_lambda_.22} parent=0 // pred_check
    _
  $region15: #{_lambda_.22} parent=0 // pred_check_branch
    %65 = sbr.rel (0) target = $region17
  $region16: #{_lambda_.22} parent=0 // pred_region
    _
  $region17: #{_lambda_.22} parent=0 // pred_fallthru
    _
  // Predicated region
  $region18: #{_lambda_.22} parent=0 // pred_check
    _
  $region19: #{_lambda_.22} parent=0 // pred_check_branch
    %67 = sbr.rel (0) target = $region21
  $region20: #{_lambda_.22} parent=0 // pred_region
    _
  $region21: #{_lambda_.22} parent=0 // pred_fallthru
    _

// kernel: _lambda_.23
$region0: #{_lambda_.23}
  #allocation0 [shape = 'u32[]', space=smem, size = 0x4, offset = 0x4, fixed_abs, tag = 'smem constant byte address 0x4 - core index']
  #allocation1 [shape = 'u32[144,128]{1,0:T(1,128)}', space=vmem, size = 0x12000, scoped, tag = 'internal scratch']
  #allocation2 [shape = 'f32[16,64]{1,0:T(8,128)}', space=vmem, size = 0x2000, scoped, tag = 'scratch operand']
  %s0 = inlined_call_operand.vmem [shape: f32[16,32], index: 0, kind: input, shape index: {}]
  %s1 = inlined_call_operand.vmem [shape: f32[32,64], index: 1, kind: input, shape index: {}]
  %s2 = inlined_call_operand.hbm [shape: f32[16,64], index: 2, kind: output, shape index: {}]
  %s3 = sld [smem:[#allocation0]]
  $region26: #{_lambda_.23} parent=0
    _
  %s5 = ssub.s32 1, %s3
  %s6 = scalar_select 0, %s5, %s3
  $region1: #{_lambda_.23} parent=0
    #allocation3 [shape = 'u8[8192]{0}', space=vmem, size = 0x2000, scoped, tag = 'output window, operand 0, single buffered']
    #allocation4 [shape = 's32[1]{0}', space=sflag, size = 0x4, scoped, tag = 'scoped memory for _lambda_.23']
    %7 = vsyncpa [#allocation4], 0
    // Predicated region
    $region2: #{_lambda_.23} parent=1 // pred_check
      _
    $region3: #{_lambda_.23} parent=1 // pred_check_branch
      %9 = sbr.rel (0) target = $region5
    $region4: #{_lambda_.23} parent=1 // pred_region
      _
    $region5: #{_lambda_.23} parent=1 // pred_fallthru
      _
    // Predicated region
    $region6: #{_lambda_.23} parent=1 // pred_check
      _
    $region7: #{_lambda_.23} parent=1 // pred_check_branch
      %11 = sbr.rel (0) target = $region9
    $region8: #{_lambda_.23} parent=1 // pred_region
      _
    $region9: #{_lambda_.23} parent=1 // pred_fallthru
      _
    %p12 = scmp.eq.s32.totalorder 0, 0
    // Predicated region
    $region10: #{_lambda_.23} parent=1 // pred_check
      %p13 = pneg %p12
    $region11: #{_lambda_.23} parent=1 // pred_check_branch
      %15 = sbr.rel (%p13) target = $region13
    $region12: #{_lambda_.23} parent=1 // pred_region
      %vm16 = vcmask 523264
      %17 = vst.msk [vmem:[#allocation2] sm:$0xff] %vm16, 0.0
      %18 = vst.msk [vmem:[#allocation2 + $0x8] sm:$0xff] %vm16, 0.0
    $region13: #{_lambda_.23} parent=1 // pred_fallthru
      _
    %v19 = vld [vmem:[#allocation2] sm:$0xff]
    %v20 = vld [vmem:[#allocation2 + $0x8] sm:$0xff]
    %v21 = vld [vmem:[%s0] sm:$0xff]
    %v22 = vld [vmem:[%s0 + $0x8] sm:$0xff]
    %v23 = vld [vmem:[%s1] sm:$0xff]
    %v24 = vld [vmem:[%s1 + $0x8] sm:$0xff]
    %v25 = vld [vmem:[%s1 + $0x10] sm:$0xff]
    %v26 = vld [vmem:[%s1 + $0x18] sm:$0xff]
    %vm27 = vcmask 261120
    %v29 = vsel %vm27, %v21, 0
    %v32 = vsel %vm27, %v22, 0
    %34 = vmatprep.subr.mxu0 0.0
    %35 = vmatpush1.msra.mxu0 %v23
    %36 = vmatprep.subr.mxu0 0.0
    %37 = vmatpush1.msra.mxu0 %v24
    %38 = vmatprep.subr.mxu0 0.0
    %39 = vmatpush1.msra.mxu0 %v25
    %40 = vmatprep.subr.mxu0 0.0
    %41 = vmatpush1.msra.mxu0 %v26
    %42 = vmatprep.subr.mxu0 0.0
    %43 = vmatpush1.msra.mxu0 0.0
    %44 = vmatprep.subr.mxu0 0.0
    %45 = vmatpush1.msra.mxu0 0.0
    %46 = vmatprep.subr.mxu0 0.0
    %47 = vmatpush1.msra.mxu0 0.0
    %48 = vmatprep.subr.mxu0 0.0
    %49 = vmatpush1.msra.mxu0 0.0
    %50 = vmatprep.subr.mxu0 0.0
    %51 = vmatpush1.msra.mxu0 0.0
    %52 = vmatprep.subr.mxu0 0.0
    %53 = vmatpush1.msra.mxu0 0.0
    %54 = vmatprep.subr.mxu0 0.0
    %55 = vmatpush1.msra.mxu0 0.0
    %56 = vmatprep.subr.mxu0 0.0
    %57 = vmatpush1.msra.mxu0 0.0
    %58 = vmatprep.subr.mxu0 0.0
    %59 = vmatpush1.msra.mxu0 0.0
    %60 = vmatprep.subr.mxu0 0.0
    %61 = vmatpush1.msra.mxu0 0.0
    %62 = vmatprep.subr.mxu0 0.0
    %63 = vmatpush1.msra.mxu0 0.0
    %64 = vmatprep.subr.mxu0 0.0
    %65 = vmatpush1.msra.mxu0 0.0
    %66 = vmatprep.subr.mxu0 0.0
    %67 = vmatpush1.msra.mxu0 0.0
    %68 = vmatprep.subr.mxu0 0.0
    %69 = vmatpush1.msra.mxu0 0.0
    %70 = vmatprep.subr.mxu0 0.0
    %71 = vmatpush1.msra.mxu0 0.0
    %72 = vmatprep.subr.mxu0 0.0
    %73 = vmatpush1.msra.mxu0 0.0
    %74 = vmatprep.subr.mxu0 0.0
    %75 = vmatpush1.msra.mxu0 0.0
    %76 = vmatprep.subr.mxu0 0.0
    %77 = vmatpush1.msra.mxu0 0.0
    %78 = vmatprep.subr.mxu0 0.0
    %79 = vmatpush1.msra.mxu0 0.0
    %80 = vmatprep.subr.mxu0 0.0
    %81 = vmatpush1.msra.mxu0 0.0
    %82 = vmatprep.subr.mxu0 0.0
    %83 = vmatpush1.msra.mxu0 0.0
    %84 = vmatprep.subr.mxu0 0.0
    %85 = vmatpush1.msra.mxu0 0.0
    %86 = vmatprep.subr.mxu0 0.0
    %87 = vmatpush1.msra.mxu0 0.0
    %88 = vmatprep.subr.mxu0 0.0
    %89 = vmatpush1.msra.mxu0 0.0
    %90 = vmatprep.subr.mxu0 0.0
    %91 = vmatpush1.msra.mxu0 0.0
    %92 = vmatprep.subr.mxu0 0.0
    %93 = vmatpush1.msra.mxu0 0.0
    %94 = vmatprep.subr.mxu0 0.0
    %95 = vmatpush1.msra.mxu0 0.0
    %96 = vmatprep.subr.mxu0 0.0
    %97 = vmatpush1.msra.mxu0 0.0
    %98 = vmatprep.mubr.f32.mxu0 0.0
    %99 = vmatmul.mubr.f32.gmra.mrb[0].mxu0 %v29
    %v100 = vpop.f32.mrb[0].mxu0
    %v101 = vadd.f32 0.0, %v100
    %v102 = vpop.f32.mrb[0].mxu0
    %103 = vmatprep.mubr.f32.mxu0 0.0
    %104 = vmatmul.mubr.f32.gmra.mrb[0].mxu0 %v32
    %v105 = vpop.f32.mrb[0].mxu0
    %v106 = vadd.f32 0.0, %v105
    %v107 = vpop.f32.mrb[0].mxu0
    %108 = vdwg.mxu0
    %v109 = vadd.f32 %v19, %v101
    %v110 = vadd.f32 %v20, %v106
    %vm111 = vcmask 523264
    %112 = vst.msk [vmem:[#allocation2] sm:$0xff] %vm111, %v109
    %113 = vst.msk [vmem:[#allocation2 + $0x8] sm:$0xff] %vm111, %v110
    // Predicated region
    $region14: #{_lambda_.23} parent=1 // pred_check
      %p114 = pneg %p12
    $region15: #{_lambda_.23} parent=1 // pred_check_branch
      %116 = sbr.rel (%p114) target = $region17
    $region16: #{_lambda_.23} parent=1 // pred_region
      %v117 = vld [vmem:[#allocation2] sm:$0xff]
      %v118 = vld [vmem:[#allocation2 + $0x8] sm:$0xff]
      %119 = vst.msk [vmem:[#allocation3] sm:$0xff] %vm111, %v117
      %120 = vst.msk [vmem:[#allocation3 + $0x8] sm:$0xff] %vm111, %v118
    $region17: #{_lambda_.23} parent=1 // pred_fallthru
      _
    // Predicated region
    $region18: #{_lambda_.23} parent=1 // pred_check
      _
    $region19: #{_lambda_.23} parent=1 // pred_check_branch
      %122 = sbr.rel (0) target = $region21
    $region20: #{_lambda_.23} parent=1 // pred_region
      %s124 = ssub.s32 256, 256
      %125 = vsyncadd [#allocation4], %s124
      %s126 = sshll.u32 [#allocation3], 4
      %s127 = int_to_ptr.vmem [resolvable:$true] %s126
      %132 = dma.vmem_to_hbm [thread:$0]  %s127, 256, %s2, [#allocation4], 128, 128, 8
    $region21: #{_lambda_.23} parent=1 // pred_fallthru
      _
    // Predicated region
    $region22: #{_lambda_.23} parent=1 // pred_check
      _
    $region23: #{_lambda_.23} parent=1 // pred_check_branch
      %134 = sbr.rel (0) target = $region25
    $region24: #{_lambda_.23} parent=1 // pred_region
      %135 = dma.done [#allocation4], 256
    $region25: #{_lambda_.23} parent=1 // pred_fallthru
      _
    %136 = vsyncpa [#allocation4], 1

// kernel: _lambda_.16
$region0: #{_lambda_.16}
  #allocation0 [shape = 'u32[]', space=smem, size = 0x4, offset = 0x4, fixed_abs, tag = 'smem constant byte address 0x4 - core index']
  #allocation1 [shape = 'u32[144,128]{1,0:T(1,128)}', space=vmem, size = 0x12000, scoped, tag = 'internal scratch']
  #allocation2 [shape = 'f32[16,32]{1,0:T(8,128)}', space=vmem, size = 0x2000, scoped, tag = 'scratch operand']
  %s0 = inlined_call_operand.vmem [shape: f32[16,128], index: 0, kind: input, shape index: {}]
  %s1 = inlined_call_operand.vmem [shape: f32[128,32], index: 1, kind: input, shape index: {}]
  %s2 = inlined_call_operand.vmem [shape: f32[1,32], index: 2, kind: input, shape index: {}]
  %s3 = inlined_call_operand.vmem [shape: f32[16,32], index: 3, kind: input, shape index: {}]
  %s4 = inlined_call_operand.vmem [shape: f32[1,32], index: 4, kind: input, shape index: {}]
  %s5 = inlined_call_operand.vmem [shape: f32[1,32], index: 5, kind: input, shape index: {}]
  %s6 = inlined_call_operand.vmem [shape: f32[16,32], index: 6, kind: output, shape index: {}]
  %s7 = sld [smem:[#allocation0]]
  $region42: #{_lambda_.16} parent=0
    _
  %s9 = ssub.s32 1, %s7
  %s10 = scalar_select 0, %s9, %s7
  // Predicated region
  $region2: #{_lambda_.16} parent=0 // pred_check
    _
  $region3: #{_lambda_.16} parent=0 // pred_check_branch
    %12 = sbr.rel (0) target = $region5
  $region4: #{_lambda_.16} parent=0 // pred_region
    _
  $region5: #{_lambda_.16} parent=0 // pred_fallthru
    _
  // Predicated region
  $region6: #{_lambda_.16} parent=0 // pred_check
    _
  $region7: #{_lambda_.16} parent=0 // pred_check_branch
    %14 = sbr.rel (0) target = $region9
  $region8: #{_lambda_.16} parent=0 // pred_region
    _
  $region9: #{_lambda_.16} parent=0 // pred_fallthru
    _
  // Predicated region
  $region10: #{_lambda_.16} parent=0 // pred_check
    _
  $region11: #{_lambda_.16} parent=0 // pred_check_branch
    %16 = sbr.rel (0) target = $region13
  $region12: #{_lambda_.16} parent=0 // pred_region
    _
  $region13: #{_lambda_.16} parent=0 // pred_fallthru
    _
  // Predicated region
  $region14: #{_lambda_.16} parent=0 // pred_check
    _
  $region15: #{_lambda_.16} parent=0 // pred_check_branch
    %18 = sbr.rel (0) target = $region17
  $region16: #{_lambda_.16} parent=0 // pred_region
    _
  $region17: #{_lambda_.16} parent=0 // pred_fallthru
    _
  // Predicated region
  $region18: #{_lambda_.16} parent=0 // pred_check
    _
  $region19: #{_lambda_.16} parent=0 // pred_check_branch
    %20 = sbr.rel (0) target = $region21
  $region20: #{_lambda_.16} parent=0 // pred_region
    _
  $region21: #{_lambda_.16} parent=0 // pred_fallthru
    _
  // Predicated region
  $region22: #{_lambda_.16} parent=0 // pred_check
    _
  $region23: #{_lambda_.16} parent=0 // pred_check_branch
    %22 = sbr.rel (0) target = $region25
  $region24: #{_lambda_.16} parent=0 // pred_region
    _
  $region25: #{_lambda_.16} parent=0 // pred_fallthru
    _
  %p23 = scmp.eq.s32.totalorder 0, 0
  // Predicated region
  $region26: #{_lambda_.16} parent=0 // pred_check
    %p24 = pneg %p23
  $region27: #{_lambda_.16} parent=0 // pred_check_branch
    %26 = sbr.rel (%p24) target = $region29
  $region28: #{_lambda_.16} parent=0 // pred_region
    %vm27 = vcmask 261120
    %28 = vst.msk [vmem:[#allocation2] sm:$0xff] %vm27, 0.0
    %29 = vst.msk [vmem:[#allocation2 + $0x8] sm:$0xff] %vm27, 0.0
  $region29: #{_lambda_.16} parent=0 // pred_fallthru
    _
  %v30 = vld [vmem:[#allocation2] sm:$0xff]
  %v31 = vld [vmem:[#allocation2 + $0x8] sm:$0xff]
  %v32 = vld [vmem:[%s0] sm:$0xff]
  %v33 = vld [vmem:[%s0 + $0x8] sm:$0xff]
  %v34 = vld [vmem:[%s1] sm:$0xff]
  %v35 = vld [vmem:[%s1 + $0x8] sm:$0xff]
  %v36 = vld [vmem:[%s1 + $0x10] sm:$0xff]
  %v37 = vld [vmem:[%s1 + $0x18] sm:$0xff]
  %v38 = vld [vmem:[%s1 + $0x20] sm:$0xff]
  %v39 = vld [vmem:[%s1 + $0x28] sm:$0xff]
  %v40 = vld [vmem:[%s1 + $0x30] sm:$0xff]
  %v41 = vld [vmem:[%s1 + $0x38] sm:$0xff]
  %v42 = vld [vmem:[%s1 + $0x40] sm:$0xff]
  %v43 = vld [vmem:[%s1 + $0x48] sm:$0xff]
  %v44 = vld [vmem:[%s1 + $0x50] sm:$0xff]
  %v45 = vld [vmem:[%s1 + $0x58] sm:$0xff]
  %v46 = vld [vmem:[%s1 + $0x60] sm:$0xff]
  %v47 = vld [vmem:[%s1 + $0x68] sm:$0xff]
  %v48 = vld [vmem:[%s1 + $0x70] sm:$0xff]
  %v49 = vld [vmem:[%s1 + $0x78] sm:$0xff]
  %50 = vmatprep.subr.mxu0 0.0
  %51 = vmatpush1.msra.mxu0 %v34
  %52 = vmatprep.subr.mxu0 0.0
  %53 = vmatpush1.msra.mxu0 %v35
  %54 = vmatprep.subr.mxu0 0.0
  %55 = vmatpush1.msra.mxu0 %v36
  %56 = vmatprep.subr.mxu0 0.0
  %57 = vmatpush1.msra.mxu0 %v37
  %58 = vmatprep.subr.mxu0 0.0
  %59 = vmatpush1.msra.mxu0 %v38
  %60 = vmatprep.subr.mxu0 0.0
  %61 = vmatpush1.msra.mxu0 %v39
  %62 = vmatprep.subr.mxu0 0.0
  %63 = vmatpush1.msra.mxu0 %v40
  %64 = vmatprep.subr.mxu0 0.0
  %65 = vmatpush1.msra.mxu0 %v41
  %66 = vmatprep.subr.mxu0 0.0
  %67 = vmatpush1.msra.mxu0 %v42
  %68 = vmatprep.subr.mxu0 0.0
  %69 = vmatpush1.msra.mxu0 %v43
  %70 = vmatprep.subr.mxu0 0.0
  %71 = vmatpush1.msra.mxu0 %v44
  %72 = vmatprep.subr.mxu0 0.0
  %73 = vmatpush1.msra.mxu0 %v45
  %74 = vmatprep.subr.mxu0 0.0
  %75 = vmatpush1.msra.mxu0 %v46
  %76 = vmatprep.subr.mxu0 0.0
  %77 = vmatpush1.msra.mxu0 %v47
  %78 = vmatprep.subr.mxu0 0.0
  %79 = vmatpush1.msra.mxu0 %v48
  %80 = vmatprep.subr.mxu0 0.0
  %81 = vmatpush1.msra.mxu0 %v49
  %82 = vmatprep.subr.mxu0 0.0
  %83 = vmatpush1.msra.mxu0 0.0
  %84 = vmatprep.subr.mxu0 0.0
  %85 = vmatpush1.msra.mxu0 0.0
  %86 = vmatprep.subr.mxu0 0.0
  %87 = vmatpush1.msra.mxu0 0.0
  %88 = vmatprep.subr.mxu0 0.0
  %89 = vmatpush1.msra.mxu0 0.0
  %90 = vmatprep.subr.mxu0 0.0
  %91 = vmatpush1.msra.mxu0 0.0
  %92 = vmatprep.subr.mxu0 0.0
  %93 = vmatpush1.msra.mxu0 0.0
  %94 = vmatprep.subr.mxu0 0.0
  %95 = vmatpush1.msra.mxu0 0.0
  %96 = vmatprep.subr.mxu0 0.0
  %97 = vmatpush1.msra.mxu0 0.0
  %98 = vmatprep.subr.mxu0 0.0
  %99 = vmatpush1.msra.mxu0 0.0
  %100 = vmatprep.subr.mxu0 0.0
  %101 = vmatpush1.msra.mxu0 0.0
  %102 = vmatprep.subr.mxu0 0.0
  %103 = vmatpush1.msra.mxu0 0.0
  %104 = vmatprep.subr.mxu0 0.0
  %105 = vmatpush1.msra.mxu0 0.0
  %106 = vmatprep.subr.mxu0 0.0
  %107 = vmatpush1.msra.mxu0 0.0
  %108 = vmatprep.subr.mxu0 0.0
  %109 = vmatpush1.msra.mxu0 0.0
  %110 = vmatprep.subr.mxu0 0.0
  %111 = vmatpush1.msra.mxu0 0.0
  %112 = vmatprep.subr.mxu0 0.0
  %113 = vmatpush1.msra.mxu0 0.0
  %114 = vmatprep.mubr.f32.mxu0 0.0
  %115 = vmatmul.mubr.f32.gmra.mrb[0].mxu0 %v32
  %v116 = vpop.f32.mrb[0].mxu0
  %v117 = vadd.f32 0.0, %v116
  %v118 = vpop.f32.mrb[0].mxu0
  %119 = vmatprep.mubr.f32.mxu0 0.0
  %120 = vmatmul.mubr.f32.gmra.mrb[0].mxu0 %v33
  %v121 = vpop.f32.mrb[0].mxu0
  %v122 = vadd.f32 0.0, %v121
  %v123 = vpop.f32.mrb[0].mxu0
  %124 = vdwg.mxu0
  %v125 = vadd.f32 %v30, %v117
  %v126 = vadd.f32 %v31, %v122
  %vm127 = vcmask 261120
  %128 = vst.msk [vmem:[#allocation2] sm:$0xff] %vm127, %v125
  %129 = vst.msk [vmem:[#allocation2 + $0x8] sm:$0xff] %vm127, %v126
  // Predicated region
  $region30: #{_lambda_.16} parent=0 // pred_check
    %p130 = pneg %p23
  $region31: #{_lambda_.16} parent=0 // pred_check_branch
    %132 = sbr.rel (%p130) target = $region33
  $region32: #{_lambda_.16} parent=0 // pred_region
    %v133 = vld [vmem:[#allocation2] sm:$0xff]
    %v134 = vld [vmem:[#allocation2 + $0x8] sm:$0xff]
    %v135 = vld [vmem:[%s2] sm:$0x1]
    %v137 = vlaneseq
    %v138 = vshrl.u32 %v137, 7
    %v139 = vsub.s32 0, %v138
    %v140 = vrot.slane %v135, %v139
    %v142 = vadd.f32 %v133, %v140
    %v143 = vadd.f32 %v134, %v140
    %v144 = vld [vmem:[%s3] sm:$0xff]
    %v145 = vld [vmem:[%s3 + $0x8] sm:$0xff]
    %v146 = vadd.f32 %v142, %v144
    %v147 = vadd.f32 %v143, %v145
    %v148 = vsel %vm127, %v146, 0.0
    %149 = vadd.xlane.f32.xlu0 %v148
    %v150 = vpop.xlane.xlu0 %149
    %v151 = vsel %vm127, %v147, 0.0
    %152 = vadd.xlane.f32.xlu0 %v151
    %v153 = vpop.xlane.xlu0 %152
    %v154 = vrcp.pop 32.0
    %v155 = vmul.f32 %v150, %v154
    %v156 = vmul.f32 %v153, %v154
    %v157 = vsub.f32 %v146, %v155
    %v158 = vsub.f32 %v147, %v156
    %v159 = vmul.f32 %v157, %v157
    %v160 = vmul.f32 %v158, %v158
    %v161 = vsel %vm127, %v159, 0.0
    %162 = vadd.xlane.f32.xlu0 %v161
    %v163 = vpop.xlane.xlu0 %162
    %v164 = vsel %vm127, %v160, 0.0
    %165 = vadd.xlane.f32.xlu0 %v164
    %v166 = vpop.xlane.xlu0 %165
    %v167 = vmul.f32 %v163, %v154
    %v168 = vmul.f32 %v166, %v154
    %v169 = vadd.f32 %v167, 1e-05
    %v170 = vadd.f32 %v168, 1e-05
    %v171 = vrsqrt.pop %v169
    %v172 = vrsqrt.pop %v170
    %v173 = vmul.f32 %v157, %v171
    %v174 = vmul.f32 %v158, %v172
    %v175 = vld [vmem:[%s4] sm:$0x1]
    %v177 = vlaneseq
    %v178 = vshrl.u32 %v177, 7
    %v179 = vsub.s32 0, %v178
    %v180 = vrot.slane %v175, %v179
    %v182 = vmul.f32 %v173, %v180
    %v183 = vmul.f32 %v174, %v180
    %v184 = vld [vmem:[%s5] sm:$0x1]
    %v186 = vlaneseq
    %v187 = vshrl.u32 %v186, 7
    %v188 = vsub.s32 0, %v187
    %v189 = vrot.slane %v184, %v188
    %v191 = vadd.f32 %v182, %v189
    %v192 = vadd.f32 %v183, %v189
    %193 = vst.msk [vmem:[%s6] sm:$0xff] %vm127, %v191
    %194 = vst.msk [vmem:[%s6 + $0x8] sm:$0xff] %vm127, %v192
  $region33: #{_lambda_.16} parent=0 // pred_fallthru
    _
  // Predicated region
  $region34: #{_lambda_.16} parent=0 // pred_check
    _
  $region35: #{_lambda_.16} parent=0 // pred_check_branch
    %196 = sbr.rel (0) target = $region37
  $region36: #{_lambda_.16} parent=0 // pred_region
    _
  $region37: #{_lambda_.16} parent=0 // pred_fallthru
    _
  // Predicated region
  $region38: #{_lambda_.16} parent=0 // pred_check
    _
  $region39: #{_lambda_.16} parent=0 // pred_check_branch
    %198 = sbr.rel (0) target = $region41
  $region40: #{_lambda_.16} parent=0 // pred_region
    _
  $region41: #{_lambda_.16} parent=0 // pred_fallthru
    _

</llo_original>
